<compile_context>
chip_gen: v5e
topology: v5e:2x2
jax: 0.10.0
libtpu: 0.0.40
codegen_flags: <defaults>
</compile_context>

<pallas_src>
import numpy as np
import jax
import jax.numpy as jnp
from jax.experimental import pallas as pl
from jax.experimental.pallas import tpu as pltpu  # noqa: F401  (kept for clarity)

# ----------------------------- config ---------------------------------------
B = 2
C_IN = 3
H = W = 16
PATCH = 8
EMBED = 32
HEADS = 4
DH = EMBED // HEADS
DEPTH = 2
MLP_HIDDEN = 64
NB_CLASSES = 10
LN_EPS = 1e-6
N_PATCH = (H // PATCH) * (W // PATCH)
SEQ = 2 + N_PATCH                 # [CLS, lang, patch tokens...]
BS = B * SEQ
CPP = C_IN * PATCH * PATCH
LANES = 128

# ---- per-block weight slab row layout (lanes padded to 128) ----
R_WQKV = 0                        # [EMBED, 3*EMBED]
R_WO = R_WQKV + EMBED             # [EMBED, EMBED]
R_WFC1 = R_WO + EMBED             # [EMBED, MLP_HIDDEN]
R_WFC2 = R_WFC1 + EMBED           # [MLP_HIDDEN, EMBED]
R_LN1G = R_WFC2 + MLP_HIDDEN
R_LN1B = R_LN1G + 1
R_LN2G = R_LN1B + 1
R_LN2B = R_LN2G + 1
R_BQKV = R_LN2B + 1
R_BO = R_BQKV + 1
R_BFC1 = R_BO + 1
R_BFC2 = R_BFC1 + 1
BROWS = R_BFC2 + 1                # = 168 (multiple of 8)

# ---- global slab row layout ----
G_WPE = 0                         # [CPP, EMBED]
G_BPE = G_WPE + CPP
G_CLS = G_BPE + 1
G_LANG = G_CLS + 1
G_POS = G_LANG + 1                # [1 + N_PATCH, EMBED]
G_LNFG = G_POS + 1 + N_PATCH
G_LNFB = G_LNFG + 1
G_WFC = G_LNFB + 1                # [EMBED, 128] (zero-padded beyond NB_CLASSES)
G_BFC = G_WFC + EMBED
G_BIAS = G_BFC + 1                # [BS, BS] additive block-diagonal bias
GROWS = ((G_BIAS + BS + 7) // 8) * 8   # pad to multiple of 8


# ----------------------------- in-kernel helpers ----------------------------
def _mm(x, w):
    """MXU matmul: bf16 operands, f32 accumulation."""
    return jnp.dot(x.astype(jnp.bfloat16), w.astype(jnp.bfloat16),
                   preferred_element_type=jnp.float32)


def _ln(x, g, b):
    x = x.astype(jnp.float32)
    mean = jnp.mean(x, axis=-1, keepdims=True)
    xc = x - mean
    var = jnp.mean(xc * xc, axis=-1, keepdims=True)
    return xc * jax.lax.rsqrt(var + LN_EPS) * g + b


def _gelu(x):
    # exact (erf) GELU, matching torch.nn.GELU default
    return 0.5 * x * (1.0 + jax.lax.erf(x * (1.0 / (2.0 ** 0.5))))


# ----------------------------- fused Pallas kernel ---------------------------
def _fused_tips_vit_kernel(patches_ref, bslab_ref, gslab_ref, out_ref):
    """Entire TipsVitNet eval forward, VMEM/vreg-resident, single launch."""
    # ---- patch embedding (== Conv2d with kernel=stride=PATCH) ----
    w_pe = gslab_ref[G_WPE:G_WPE + CPP, 0:EMBED]
    b_pe = gslab_ref[G_BPE:G_BPE + 1, 0:EMBED]
    tok = _mm(patches_ref[...], w_pe) + b_pe                         # [B*N, D]

    # ---- sequence assembly in registers: [CLS+pos0, lang (no pos), patches+pos] ----
    cls_row = (gslab_ref[G_CLS:G_CLS + 1, 0:EMBED]
               + gslab_ref[G_POS:G_POS + 1, 0:EMBED])                # [1, D]
    lang_row = gslab_ref[G_LANG:G_LANG + 1, 0:EMBED]                 # [1, D]
    pos_patch = gslab_ref[G_POS + 1:G_POS + 1 + N_PATCH, 0:EMBED]    # [N, D]
    rows = []
    for b in range(B):
        rows.append(cls_row)
        rows.append(lang_row)
        rows.append(tok[b * N_PATCH:(b + 1) * N_PATCH, :] + pos_patch)
    x = jnp.concatenate(rows, axis=0)                                # [B*S, D] f32

    # block-diagonal additive bias (kills cross-batch attention entries)
    attn_bias = gslab_ref[G_BIAS:G_BIAS + BS, 0:BS]                  # [B*S, B*S]

    # ---- transformer blocks (statically unrolled, weights stay in VMEM) ----
    for d in range(DEPTH):
        o = d * BROWS
        ln1_g = bslab_ref[o + R_LN1G:o + R_LN1G + 1, 0:EMBED]
        ln1_b = bslab_ref[o + R_LN1B:o + R_LN1B + 1, 0:EMBED]
        h = _ln(x, ln1_g, ln1_b)

        w_qkv = bslab_ref[o + R_WQKV:o + R_WQKV + EMBED, 0:3 * EMBED]
        b_qkv = bslab_ref[o + R_BQKV:o + R_BQKV + 1, 0:3 * EMBED]
        qkv = _mm(h, w_qkv) + b_qkv                                  # [B*S, 3D]
        q = qkv[:, 0:EMBED]          # 1/sqrt(DH) already folded into Q weights
        k = qkv[:, EMBED:2 * EMBED]
        v = qkv[:, 2 * EMBED:3 * EMBED]

        heads = []
        for hh in range(HEADS):
            lo, hi = hh * DH, (hh + 1) * DH
            qh = q[:, lo:hi].astype(jnp.bfloat16)
            kh = k[:, lo:hi].astype(jnp.bfloat16)
            vh = v[:, lo:hi].astype(jnp.bfloat16)
            s = jax.lax.dot_general(
                qh, kh, dimension_numbers=(((1,), (1,)), ((), ())),
                preferred_element_type=jnp.float32)                  # [B*S, B*S]
            s = s + attn_bias
            s = s - jnp.max(s, axis=-1, keepdims=True)
            p = jnp.exp(s)
            p = p * pl.reciprocal(jnp.sum(p, axis=-1, keepdims=True), approx=True)
            heads.append(jnp.dot(p.astype(jnp.bfloat16), vh,
                                 preferred_element_type=jnp.float32))
        attn = jnp.concatenate(heads, axis=-1)                       # [B*S, D]

        w_o = bslab_ref[o + R_WO:o + R_WO + EMBED, 0:EMBED]
        b_o = bslab_ref[o + R_BO:o + R_BO + 1, 0:EMBED]
        x = x + _mm(attn, w_o) + b_o

        ln2_g = bslab_ref[o + R_LN2G:o + R_LN2G + 1, 0:EMBED]
        ln2_b = bslab_ref[o + R_LN2B:o + R_LN2B + 1, 0:EMBED]
        h2 = _ln(x, ln2_g, ln2_b)
        w_fc1 = bslab_ref[o + R_WFC1:o + R_WFC1 + EMBED, 0:MLP_HIDDEN]
        b_fc1 = bslab_ref[o + R_BFC1:o + R_BFC1 + 1, 0:MLP_HIDDEN]
        m1 = _gelu(_mm(h2, w_fc1) + b_fc1)                           # [B*S, MLP]
        w_fc2 = bslab_ref[o + R_WFC2:o + R_WFC2 + MLP_HIDDEN, 0:EMBED]
        b_fc2 = bslab_ref[o + R_BFC2:o + R_BFC2 + 1, 0:EMBED]
        x = x + _mm(m1, w_fc2) + b_fc2

    # ---- final norm + head: feat = 0.5*CLS + 0.5*lang; logits = fc(feat) ----
    ln_f_g = gslab_ref[G_LNFG:G_LNFG + 1, 0:EMBED]
    ln_f_b = gslab_ref[G_LNFB:G_LNFB + 1, 0:EMBED]
    x = _ln(x, ln_f_g, ln_f_b)                                       # [B*S, D]

    feats = []
    for b in range(B):
        c = x[b * SEQ:b * SEQ + 1, :]
        l = x[b * SEQ + 1:b * SEQ + 2, :]
        feats.append(0.5 * (c + l))
    feat = jnp.concatenate(feats, axis=0)                            # [B, D]

    w_fc = gslab_ref[G_WFC:G_WFC + EMBED, :]                         # [D, 128] padded
    b_fc = gslab_ref[G_BFC:G_BFC + 1, :]                             # [1, 128] padded
    logits = _mm(feat, w_fc) + b_fc                                  # [B, 128]
    feat_pad = jnp.concatenate(
        [feat, jnp.zeros((B, LANES - EMBED), jnp.float32)], axis=-1)  # [B, 128]
    # single lane-dense full store: rows [0:B]=padded logits, [B:2B]=padded feat
    out_ref[...] = jnp.concatenate([logits, feat_pad], axis=0)


# ----------------------------- wrapper ---------------------------------------
@jax.jit
def _forward_impl(x_img, bslab, gslab):
    gh, gw = H // PATCH, W // PATCH
    # patchify (reshape/transpose only; the patch-embed matmul runs in-kernel)
    patches = x_img.reshape(B, C_IN, gh, PATCH, gw, PATCH)
    patches = patches.transpose(0, 2, 4, 1, 3, 5).reshape(B * N_PATCH, CPP)

    out = pl.pallas_call(
        _fused_tips_vit_kernel,
        out_shape=jax.ShapeDtypeStruct((2 * B, LANES), jnp.float32),
    )(patches, bslab, gslab)

    logits = out[:B, :NB_CLASSES]
    feat = out[B:, :EMBED]
    return logits, feat


def tips_vit_net_forward(x_img, bslab, gslab, pen=False):
    """TipsVitNet.forward, eval path (train=False, sim_logit provided)."""
    assert x_img.shape == (B, C_IN, H, W)
    logits, feat = _forward_impl(x_img, bslab, gslab)
    return feat if pen else logits


# ----------------------------- params & one-time packing ---------------------
def init_params(key):
    ks = iter(jax.random.split(key, 64))
    sd = 0.02
    p = {
        "w_pe": sd * jax.random.normal(next(ks), (CPP, EMBED), jnp.float32),
        "b_pe": jnp.zeros((1, EMBED), jnp.float32),
        "cls_token": sd * jax.random.normal(next(ks), (1, EMBED), jnp.float32),
        "lang_prompt": sd * jax.random.normal(next(ks), (1, EMBED), jnp.float32),
        "pos_embed": sd * jax.random.normal(next(ks), (1 + N_PATCH, EMBED), jnp.float32),
        "ln_f_g": jnp.ones((1, EMBED), jnp.float32),
        "ln_f_b": jnp.zeros((1, EMBED), jnp.float32),
        "w_fc": sd * jax.random.normal(next(ks), (EMBED, NB_CLASSES), jnp.float32),
        "b_fc": jnp.zeros((1, NB_CLASSES), jnp.float32),
        "blocks": [],
    }
    for _ in range(DEPTH):
        p["blocks"].append({
            "ln1_g": jnp.ones((1, EMBED), jnp.float32),
            "ln1_b": jnp.zeros((1, EMBED), jnp.float32),
            "w_qkv": sd * jax.random.normal(next(ks), (EMBED, 3 * EMBED), jnp.float32),
            "b_qkv": jnp.zeros((1, 3 * EMBED), jnp.float32),
            "w_o": sd * jax.random.normal(next(ks), (EMBED, EMBED), jnp.float32),
            "b_o": jnp.zeros((1, EMBED), jnp.float32),
            "ln2_g": jnp.ones((1, EMBED), jnp.float32),
            "ln2_b": jnp.zeros((1, EMBED), jnp.float32),
            "w_fc1": sd * jax.random.normal(next(ks), (EMBED, MLP_HIDDEN), jnp.float32),
            "b_fc1": jnp.zeros((1, MLP_HIDDEN), jnp.float32),
            "w_fc2": sd * jax.random.normal(next(ks), (MLP_HIDDEN, EMBED), jnp.float32),
            "b_fc2": jnp.zeros((1, EMBED), jnp.float32),
        })
    return p


def pack_params(p):
    """One-time host-side packing of all weights into two lane-padded slabs."""
    scale = 1.0 / np.sqrt(DH)

    # ---- per-block slab ----
    bslab = np.zeros((DEPTH * BROWS, LANES), np.float32)
    for d, blk in enumerate(p["blocks"]):
        o = d * BROWS
        w_qkv = np.array(blk["w_qkv"], np.float32).copy()
        b_qkv = np.array(blk["b_qkv"], np.float32).copy()
        w_qkv[:, :EMBED] *= scale          # fold 1/sqrt(DH) into Q projection
        b_qkv[:, :EMBED] *= scale
        bslab[o + R_WQKV:o + R_WQKV + EMBED, :3 * EMBED] = w_qkv
        bslab[o + R_WO:o + R_WO + EMBED, :EMBED] = np.array(blk["w_o"])
        bslab[o + R_WFC1:o + R_WFC1 + EMBED, :MLP_HIDDEN] = np.array(blk["w_fc1"])
        bslab[o + R_WFC2:o + R_WFC2 + MLP_HIDDEN, :EMBED] = np.array(blk["w_fc2"])
        bslab[o + R_LN1G, :EMBED] = np.array(blk["ln1_g"])[0]
        bslab[o + R_LN1B, :EMBED] = np.array(blk["ln1_b"])[0]
        bslab[o + R_LN2G, :EMBED] = np.array(blk["ln2_g"])[0]
        bslab[o + R_LN2B, :EMBED] = np.array(blk["ln2_b"])[0]
        bslab[o + R_BQKV, :3 * EMBED] = b_qkv[0]
        bslab[o + R_BO, :EMBED] = np.array(blk["b_o"])[0]
        bslab[o + R_BFC1, :MLP_HIDDEN] = np.array(blk["b_fc1"])[0]
        bslab[o + R_BFC2, :EMBED] = np.array(blk["b_fc2"])[0]

    # ---- global slab ----
    gslab = np.zeros((GROWS, LANES), np.float32)
    gslab[G_WPE:G_WPE + CPP, :EMBED] = np.array(p["w_pe"])
    gslab[G_BPE, :EMBED] = np.array(p["b_pe"])[0]
    gslab[G_CLS, :EMBED] = np.array(p["cls_token"])[0]
    gslab[G_LANG, :EMBED] = np.array(p["lang_prompt"])[0]
    gslab[G_POS:G_POS + 1 + N_PATCH, :EMBED] = np.array(p["pos_embed"])
    gslab[G_LNFG, :EMBED] = np.array(p["ln_f_g"])[0]
    gslab[G_LNFB, :EMBED] = np.array(p["ln_f_b"])[0]
    gslab[G_WFC:G_WFC + EMBED, :NB_CLASSES] = np.array(p["w_fc"])
    gslab[G_BFC, :NB_CLASSES] = np.array(p["b_fc"])[0]
    # block-diagonal additive attention bias (cross-batch entries -> -1e30)
    bid = np.arange(BS) // SEQ
    bias = np.where(bid[:, None] == bid[None, :], 0.0, -1e30).astype(np.float32)
    gslab[G_BIAS:G_BIAS + BS, :BS] = bias

    return jnp.asarray(bslab), jnp.asarray(gslab)


# ----------------------------- main -------------------------------------------
if __name__ == "__main__":
    key = jax.random.PRNGKey(0)
    k_param, k_x = jax.random.split(key)
    params = init_params(k_param)
    bslab, gslab = pack_params(params)
    x = jax.random.normal(k_x, (B, C_IN, H, W), jnp.float32)          # NCHW

    logits = tips_vit_net_forward(x, bslab, gslab, pen=False)
    jax.block_until_ready(logits)
    assert logits.shape == (B, NB_CLASSES), logits.shape
    assert bool(jnp.all(jnp.isfinite(logits)))
    print("KERNEL_OK")
</pallas_src>

<mosaic_0001>
module attributes {stable_mosaic.version = 11 : i64} {
  func.func @_fused_tips_vit_kernel(%arg0: memref<8x192xf32, #tpu.memory_space<vmem>>, %arg1: memref<336x128xf32, #tpu.memory_space<vmem>>, %arg2: memref<248x128xf32, #tpu.memory_space<vmem>>, %arg3: memref<4x128xf32, #tpu.memory_space<vmem>>) attributes {dimension_semantics = [], scalar_prefetch = 0 : i64, scratch_operands = 0 : i64, tpu.core_type = #tpu.core_type<tc>} {
    %c0 = arith.constant 0 : index
    %c0_0 = arith.constant 0 : index
    %0 = vector.load %arg2[%c0, %c0_0] : memref<248x128xf32, #tpu.memory_space<vmem>>, vector<192x32xf32>
    %c192 = arith.constant 192 : index
    %c0_1 = arith.constant 0 : index
    %1 = vector.load %arg2[%c192, %c0_1] : memref<248x128xf32, #tpu.memory_space<vmem>>, vector<1x32xf32>
    %c0_2 = arith.constant 0 : index
    %c0_3 = arith.constant 0 : index
    %2 = vector.load %arg0[%c0_2, %c0_3] : memref<8x192xf32, #tpu.memory_space<vmem>>, vector<8x192xf32>
    %3 = arith.truncf %2 : vector<8x192xf32> to vector<8x192xbf16>
    %4 = arith.truncf %0 : vector<192x32xf32> to vector<192x32xbf16>
    %cst = arith.constant dense<0.000000e+00> : vector<8x32xf32>
    %5 = tpu.matmul %3, %4, %cst {dimension_numbers = #tpu.dot_dimension_numbers<[1], [0], [0], [1], [0, 0, 1, 1], [], []>} : vector<8x192xbf16>, vector<192x32xbf16>, vector<8x32xf32> -> vector<8x32xf32>
    %6 = vector.broadcast %1 : vector<1x32xf32> to vector<8x32xf32>
    %7 = arith.addf %5, %6 : vector<8x32xf32>
    %c193 = arith.constant 193 : index
    %c0_4 = arith.constant 0 : index
    %8 = vector.load %arg2[%c193, %c0_4] : memref<248x128xf32, #tpu.memory_space<vmem>>, vector<1x32xf32>
    %c195 = arith.constant 195 : index
    %c0_5 = arith.constant 0 : index
    %9 = vector.load %arg2[%c195, %c0_5] : memref<248x128xf32, #tpu.memory_space<vmem>>, vector<1x32xf32>
    %10 = arith.addf %8, %9 : vector<1x32xf32>
    %c194 = arith.constant 194 : index
    %c0_6 = arith.constant 0 : index
    %11 = vector.load %arg2[%c194, %c0_6] : memref<248x128xf32, #tpu.memory_space<vmem>>, vector<1x32xf32>
    %c196 = arith.constant 196 : index
    %c0_7 = arith.constant 0 : index
    %12 = vector.load %arg2[%c196, %c0_7] : memref<248x128xf32, #tpu.memory_space<vmem>>, vector<4x32xf32>
    %13 = vector.extract_strided_slice %7 {offsets = [0, 0], sizes = [4, 32], strides = [1, 1]} : vector<8x32xf32> to vector<4x32xf32>
    %14 = arith.addf %13, %12 : vector<4x32xf32>
    %15 = vector.extract_strided_slice %7 {offsets = [4, 0], sizes = [4, 32], strides = [1, 1]} : vector<8x32xf32> to vector<4x32xf32>
    %16 = arith.addf %15, %12 : vector<4x32xf32>
    %17 = tpu.concatenate %10, %11, %14, %10, %11, %16 in 0 : vector<1x32xf32>, vector<1x32xf32>, vector<4x32xf32>, vector<1x32xf32>, vector<1x32xf32>, vector<4x32xf32> -> vector<12x32xf32>
    %c235 = arith.constant 235 : index
    %c0_8 = arith.constant 0 : index
    %18 = vector.load %arg2[%c235, %c0_8] : memref<248x128xf32, #tpu.memory_space<vmem>>, vector<12x12xf32>
    %c160 = arith.constant 160 : index
    %c0_9 = arith.constant 0 : index
    %19 = vector.load %arg1[%c160, %c0_9] : memref<336x128xf32, #tpu.memory_space<vmem>>, vector<1x32xf32>
    %c161 = arith.constant 161 : index
    %c0_10 = arith.constant 0 : index
    %20 = vector.load %arg1[%c161, %c0_10] : memref<336x128xf32, #tpu.memory_space<vmem>>, vector<1x32xf32>
    %cst_11 = arith.constant dense<0.000000e+00> : vector<12xf32>
    %21 = vector.multi_reduction <add>, %17, %cst_11 [1] : vector<12x32xf32> to vector<12xf32>
    %22 = vector.shape_cast %21 : vector<12xf32> to vector<12x1xf32>
    %cst_12 = arith.constant 3.200000e+01 : f32
    %23 = vector.broadcast %cst_12 : f32 to vector<12x1xf32>
    %24 = arith.divf %22, %23 : vector<12x1xf32>
    %25 = vector.broadcast %24 : vector<12x1xf32> to vector<12x32xf32>
    %26 = arith.subf %17, %25 : vector<12x32xf32>
    %27 = arith.mulf %26, %26 : vector<12x32xf32>
    %cst_13 = arith.constant dense<0.000000e+00> : vector<12xf32>
    %28 = vector.multi_reduction <add>, %27, %cst_13 [1] : vector<12x32xf32> to vector<12xf32>
    %29 = vector.shape_cast %28 : vector<12xf32> to vector<12x1xf32>
    %cst_14 = arith.constant 3.200000e+01 : f32
    %30 = vector.broadcast %cst_14 : f32 to vector<12x1xf32>
    %31 = arith.divf %29, %30 : vector<12x1xf32>
    %cst_15 = arith.constant 9.99999997E-7 : f32
    %32 = vector.broadcast %cst_15 : f32 to vector<12x1xf32>
    %33 = arith.addf %31, %32 : vector<12x1xf32>
    %34 = math.rsqrt %33 : vector<12x1xf32>
    %35 = vector.broadcast %34 : vector<12x1xf32> to vector<12x32xf32>
    %36 = arith.mulf %26, %35 : vector<12x32xf32>
    %37 = vector.broadcast %19 : vector<1x32xf32> to vector<12x32xf32>
    %38 = arith.mulf %36, %37 : vector<12x32xf32>
    %39 = vector.broadcast %20 : vector<1x32xf32> to vector<12x32xf32>
    %40 = arith.addf %38, %39 : vector<12x32xf32>
    %c0_16 = arith.constant 0 : index
    %c0_17 = arith.constant 0 : index
    %41 = vector.load %arg1[%c0_16, %c0_17] : memref<336x128xf32, #tpu.memory_space<vmem>>, vector<32x96xf32>
    %c164 = arith.constant 164 : index
    %c0_18 = arith.constant 0 : index
    %42 = vector.load %arg1[%c164, %c0_18] : memref<336x128xf32, #tpu.memory_space<vmem>>, vector<1x96xf32>
    %43 = arith.truncf %40 : vector<12x32xf32> to vector<12x32xbf16>
    %44 = arith.truncf %41 : vector<32x96xf32> to vector<32x96xbf16>
    %cst_19 = arith.constant dense<0.000000e+00> : vector<12x96xf32>
    %45 = tpu.matmul %43, %44, %cst_19 {dimension_numbers = #tpu.dot_dimension_numbers<[1], [0], [0], [1], [0, 0, 1, 1], [], []>} : vector<12x32xbf16>, vector<32x96xbf16>, vector<12x96xf32> -> vector<12x96xf32>
    %46 = vector.broadcast %42 : vector<1x96xf32> to vector<12x96xf32>
    %47 = arith.addf %45, %46 : vector<12x96xf32>
    %48 = vector.extract_strided_slice %47 {offsets = [0, 0], sizes = [12, 32], strides = [1, 1]} : vector<12x96xf32> to vector<12x32xf32>
    %49 = vector.extract_strided_slice %47 {offsets = [0, 32], sizes = [12, 32], strides = [1, 1]} : vector<12x96xf32> to vector<12x32xf32>
    %50 = vector.extract_strided_slice %47 {offsets = [0, 64], sizes = [12, 32], strides = [1, 1]} : vector<12x96xf32> to vector<12x32xf32>
    %51 = vector.extract_strided_slice %48 {offsets = [0, 0], sizes = [12, 8], strides = [1, 1]} : vector<12x32xf32> to vector<12x8xf32>
    %52 = arith.truncf %51 : vector<12x8xf32> to vector<12x8xbf16>
    %53 = vector.extract_strided_slice %49 {offsets = [0, 0], sizes = [12, 8], strides = [1, 1]} : vector<12x32xf32> to vector<12x8xf32>
    %54 = arith.truncf %53 : vector<12x8xf32> to vector<12x8xbf16>
    %55 = vector.extract_strided_slice %50 {offsets = [0, 0], sizes = [12, 8], strides = [1, 1]} : vector<12x32xf32> to vector<12x8xf32>
    %56 = arith.truncf %55 : vector<12x8xf32> to vector<12x8xbf16>
    %cst_20 = arith.constant dense<0.000000e+00> : vector<12x12xf32>
    %57 = tpu.matmul %52, %54, %cst_20 {dimension_numbers = #tpu.dot_dimension_numbers<[1], [1], [0], [0], [0, 0, 1, 0], [], []>} : vector<12x8xbf16>, vector<12x8xbf16>, vector<12x12xf32> -> vector<12x12xf32>
    %58 = arith.addf %57, %18 : vector<12x12xf32>
    %cst_21 = arith.constant dense<0xFF800000> : vector<12xf32>
    %59 = vector.multi_reduction <maximumf>, %58, %cst_21 [1] : vector<12x12xf32> to vector<12xf32>
    %60 = vector.shape_cast %59 : vector<12xf32> to vector<12x1xf32>
    %61 = vector.broadcast %60 : vector<12x1xf32> to vector<12x12xf32>
    %62 = arith.subf %58, %61 : vector<12x12xf32>
    %63 = math.exp %62 : vector<12x12xf32>
    %cst_22 = arith.constant dense<0.000000e+00> : vector<12xf32>
    %64 = vector.multi_reduction <add>, %63, %cst_22 [1] : vector<12x12xf32> to vector<12xf32>
    %65 = vector.shape_cast %64 : vector<12xf32> to vector<12x1xf32>
    %66 = tpu.reciprocal %65 {approx = true} : vector<12x1xf32> -> vector<12x1xf32>
    %67 = vector.broadcast %66 : vector<12x1xf32> to vector<12x12xf32>
    %68 = arith.mulf %63, %67 : vector<12x12xf32>
    %69 = arith.truncf %68 : vector<12x12xf32> to vector<12x12xbf16>
    %cst_23 = arith.constant dense<0.000000e+00> : vector<12x8xf32>
    %70 = tpu.matmul %69, %56, %cst_23 {dimension_numbers = #tpu.dot_dimension_numbers<[1], [0], [0], [1], [0, 0, 1, 1], [], []>} : vector<12x12xbf16>, vector<12x8xbf16>, vector<12x8xf32> -> vector<12x8xf32>
    %71 = vector.extract_strided_slice %48 {offsets = [0, 8], sizes = [12, 8], strides = [1, 1]} : vector<12x32xf32> to vector<12x8xf32>
    %72 = arith.truncf %71 : vector<12x8xf32> to vector<12x8xbf16>
    %73 = vector.extract_strided_slice %49 {offsets = [0, 8], sizes = [12, 8], strides = [1, 1]} : vector<12x32xf32> to vector<12x8xf32>
    %74 = arith.truncf %73 : vector<12x8xf32> to vector<12x8xbf16>
    %75 = vector.extract_strided_slice %50 {offsets = [0, 8], sizes = [12, 8], strides = [1, 1]} : vector<12x32xf32> to vector<12x8xf32>
    %76 = arith.truncf %75 : vector<12x8xf32> to vector<12x8xbf16>
    %cst_24 = arith.constant dense<0.000000e+00> : vector<12x12xf32>
    %77 = tpu.matmul %72, %74, %cst_24 {dimension_numbers = #tpu.dot_dimension_numbers<[1], [1], [0], [0], [0, 0, 1, 0], [], []>} : vector<12x8xbf16>, vector<12x8xbf16>, vector<12x12xf32> -> vector<12x12xf32>
    %78 = arith.addf %77, %18 : vector<12x12xf32>
    %cst_25 = arith.constant dense<0xFF800000> : vector<12xf32>
    %79 = vector.multi_reduction <maximumf>, %78, %cst_25 [1] : vector<12x12xf32> to vector<12xf32>
    %80 = vector.shape_cast %79 : vector<12xf32> to vector<12x1xf32>
    %81 = vector.broadcast %80 : vector<12x1xf32> to vector<12x12xf32>
    %82 = arith.subf %78, %81 : vector<12x12xf32>
    %83 = math.exp %82 : vector<12x12xf32>
    %cst_26 = arith.constant dense<0.000000e+00> : vector<12xf32>
    %84 = vector.multi_reduction <add>, %83, %cst_26 [1] : vector<12x12xf32> to vector<12xf32>
    %85 = vector.shape_cast %84 : vector<12xf32> to vector<12x1xf32>
    %86 = tpu.reciprocal %85 {approx = true} : vector<12x1xf32> -> vector<12x1xf32>
    %87 = vector.broadcast %86 : vector<12x1xf32> to vector<12x12xf32>
    %88 = arith.mulf %83, %87 : vector<12x12xf32>
    %89 = arith.truncf %88 : vector<12x12xf32> to vector<12x12xbf16>
    %cst_27 = arith.constant dense<0.000000e+00> : vector<12x8xf32>
    %90 = tpu.matmul %89, %76, %cst_27 {dimension_numbers = #tpu.dot_dimension_numbers<[1], [0], [0], [1], [0, 0, 1, 1], [], []>} : vector<12x12xbf16>, vector<12x8xbf16>, vector<12x8xf32> -> vector<12x8xf32>
    %91 = vector.extract_strided_slice %48 {offsets = [0, 16], sizes = [12, 8], strides = [1, 1]} : vector<12x32xf32> to vector<12x8xf32>
    %92 = arith.truncf %91 : vector<12x8xf32> to vector<12x8xbf16>
    %93 = vector.extract_strided_slice %49 {offsets = [0, 16], sizes = [12, 8], strides = [1, 1]} : vector<12x32xf32> to vector<12x8xf32>
    %94 = arith.truncf %93 : vector<12x8xf32> to vector<12x8xbf16>
    %95 = vector.extract_strided_slice %50 {offsets = [0, 16], sizes = [12, 8], strides = [1, 1]} : vector<12x32xf32> to vector<12x8xf32>
    %96 = arith.truncf %95 : vector<12x8xf32> to vector<12x8xbf16>
    %cst_28 = arith.constant dense<0.000000e+00> : vector<12x12xf32>
    %97 = tpu.matmul %92, %94, %cst_28 {dimension_numbers = #tpu.dot_dimension_numbers<[1], [1], [0], [0], [0, 0, 1, 0], [], []>} : vector<12x8xbf16>, vector<12x8xbf16>, vector<12x12xf32> -> vector<12x12xf32>
    %98 = arith.addf %97, %18 : vector<12x12xf32>
    %cst_29 = arith.constant dense<0xFF800000> : vector<12xf32>
    %99 = vector.multi_reduction <maximumf>, %98, %cst_29 [1] : vector<12x12xf32> to vector<12xf32>
    %100 = vector.shape_cast %99 : vector<12xf32> to vector<12x1xf32>
    %101 = vector.broadcast %100 : vector<12x1xf32> to vector<12x12xf32>
    %102 = arith.subf %98, %101 : vector<12x12xf32>
    %103 = math.exp %102 : vector<12x12xf32>
    %cst_30 = arith.constant dense<0.000000e+00> : vector<12xf32>
    %104 = vector.multi_reduction <add>, %103, %cst_30 [1] : vector<12x12xf32> to vector<12xf32>
    %105 = vector.shape_cast %104 : vector<12xf32> to vector<12x1xf32>
    %106 = tpu.reciprocal %105 {approx = true} : vector<12x1xf32> -> vector<12x1xf32>
    %107 = vector.broadcast %106 : vector<12x1xf32> to vector<12x12xf32>
    %108 = arith.mulf %103, %107 : vector<12x12xf32>
    %109 = arith.truncf %108 : vector<12x12xf32> to vector<12x12xbf16>
    %cst_31 = arith.constant dense<0.000000e+00> : vector<12x8xf32>
    %110 = tpu.matmul %109, %96, %cst_31 {dimension_numbers = #tpu.dot_dimension_numbers<[1], [0], [0], [1], [0, 0, 1, 1], [], []>} : vector<12x12xbf16>, vector<12x8xbf16>, vector<12x8xf32> -> vector<12x8xf32>
    %111 = vector.extract_strided_slice %48 {offsets = [0, 24], sizes = [12, 8], strides = [1, 1]} : vector<12x32xf32> to vector<12x8xf32>
    %112 = arith.truncf %111 : vector<12x8xf32> to vector<12x8xbf16>
    %113 = vector.extract_strided_slice %49 {offsets = [0, 24], sizes = [12, 8], strides = [1, 1]} : vector<12x32xf32> to vector<12x8xf32>
    %114 = arith.truncf %113 : vector<12x8xf32> to vector<12x8xbf16>
    %115 = vector.extract_strided_slice %50 {offsets = [0, 24], sizes = [12, 8], strides = [1, 1]} : vector<12x32xf32> to vector<12x8xf32>
    %116 = arith.truncf %115 : vector<12x8xf32> to vector<12x8xbf16>
    %cst_32 = arith.constant dense<0.000000e+00> : vector<12x12xf32>
    %117 = tpu.matmul %112, %114, %cst_32 {dimension_numbers = #tpu.dot_dimension_numbers<[1], [1], [0], [0], [0, 0, 1, 0], [], []>} : vector<12x8xbf16>, vector<12x8xbf16>, vector<12x12xf32> -> vector<12x12xf32>
    %118 = arith.addf %117, %18 : vector<12x12xf32>
    %cst_33 = arith.constant dense<0xFF800000> : vector<12xf32>
    %119 = vector.multi_reduction <maximumf>, %118, %cst_33 [1] : vector<12x12xf32> to vector<12xf32>
    %120 = vector.shape_cast %119 : vector<12xf32> to vector<12x1xf32>
    %121 = vector.broadcast %120 : vector<12x1xf32> to vector<12x12xf32>
    %122 = arith.subf %118, %121 : vector<12x12xf32>
    %123 = math.exp %122 : vector<12x12xf32>
    %cst_34 = arith.constant dense<0.000000e+00> : vector<12xf32>
    %124 = vector.multi_reduction <add>, %123, %cst_34 [1] : vector<12x12xf32> to vector<12xf32>
    %125 = vector.shape_cast %124 : vector<12xf32> to vector<12x1xf32>
    %126 = tpu.reciprocal %125 {approx = true} : vector<12x1xf32> -> vector<12x1xf32>
    %127 = vector.broadcast %126 : vector<12x1xf32> to vector<12x12xf32>
    %128 = arith.mulf %123, %127 : vector<12x12xf32>
    %129 = arith.truncf %128 : vector<12x12xf32> to vector<12x12xbf16>
    %cst_35 = arith.constant dense<0.000000e+00> : vector<12x8xf32>
    %130 = tpu.matmul %129, %116, %cst_35 {dimension_numbers = #tpu.dot_dimension_numbers<[1], [0], [0], [1], [0, 0, 1, 1], [], []>} : vector<12x12xbf16>, vector<12x8xbf16>, vector<12x8xf32> -> vector<12x8xf32>
    %131 = tpu.concatenate %70, %90, %110, %130 in 1 : vector<12x8xf32>, vector<12x8xf32>, vector<12x8xf32>, vector<12x8xf32> -> vector<12x32xf32>
    %c32 = arith.constant 32 : index
    %c0_36 = arith.constant 0 : index
    %132 = vector.load %arg1[%c32, %c0_36] : memref<336x128xf32, #tpu.memory_space<vmem>>, vector<32x32xf32>
    %c165 = arith.constant 165 : index
    %c0_37 = arith.constant 0 : index
    %133 = vector.load %arg1[%c165, %c0_37] : memref<336x128xf32, #tpu.memory_space<vmem>>, vector<1x32xf32>
    %134 = arith.truncf %131 : vector<12x32xf32> to vector<12x32xbf16>
    %135 = arith.truncf %132 : vector<32x32xf32> to vector<32x32xbf16>
    %cst_38 = arith.constant dense<0.000000e+00> : vector<12x32xf32>
    %136 = tpu.matmul %134, %135, %cst_38 {dimension_numbers = #tpu.dot_dimension_numbers<[1], [0], [0], [1], [0, 0, 1, 1], [], []>} : vector<12x32xbf16>, vector<32x32xbf16>, vector<12x32xf32> -> vector<12x32xf32>
    %137 = arith.addf %17, %136 : vector<12x32xf32>
    %138 = vector.broadcast %133 : vector<1x32xf32> to vector<12x32xf32>
    %139 = arith.addf %137, %138 : vector<12x32xf32>
    %c162 = arith.constant 162 : index
    %c0_39 = arith.constant 0 : index
    %140 = vector.load %arg1[%c162, %c0_39] : memref<336x128xf32, #tpu.memory_space<vmem>>, vector<1x32xf32>
    %c163 = arith.constant 163 : index
    %c0_40 = arith.constant 0 : index
    %141 = vector.load %arg1[%c163, %c0_40] : memref<336x128xf32, #tpu.memory_space<vmem>>, vector<1x32xf32>
    %cst_41 = arith.constant dense<0.000000e+00> : vector<12xf32>
    %142 = vector.multi_reduction <add>, %139, %cst_41 [1] : vector<12x32xf32> to vector<12xf32>
    %143 = vector.shape_cast %142 : vector<12xf32> to vector<12x1xf32>
    %cst_42 = arith.constant 3.200000e+01 : f32
    %144 = vector.broadcast %cst_42 : f32 to vector<12x1xf32>
    %145 = arith.divf %143, %144 : vector<12x1xf32>
    %146 = vector.broadcast %145 : vector<12x1xf32> to vector<12x32xf32>
    %147 = arith.subf %139, %146 : vector<12x32xf32>
    %148 = arith.mulf %147, %147 : vector<12x32xf32>
    %cst_43 = arith.constant dense<0.000000e+00> : vector<12xf32>
    %149 = vector.multi_reduction <add>, %148, %cst_43 [1] : vector<12x32xf32> to vector<12xf32>
    %150 = vector.shape_cast %149 : vector<12xf32> to vector<12x1xf32>
    %cst_44 = arith.constant 3.200000e+01 : f32
    %151 = vector.broadcast %cst_44 : f32 to vector<12x1xf32>
    %152 = arith.divf %150, %151 : vector<12x1xf32>
    %cst_45 = arith.constant 9.99999997E-7 : f32
    %153 = vector.broadcast %cst_45 : f32 to vector<12x1xf32>
    %154 = arith.addf %152, %153 : vector<12x1xf32>
    %155 = math.rsqrt %154 : vector<12x1xf32>
    %156 = vector.broadcast %155 : vector<12x1xf32> to vector<12x32xf32>
    %157 = arith.mulf %147, %156 : vector<12x32xf32>
    %158 = vector.broadcast %140 : vector<1x32xf32> to vector<12x32xf32>
    %159 = arith.mulf %157, %158 : vector<12x32xf32>
    %160 = vector.broadcast %141 : vector<1x32xf32> to vector<12x32xf32>
    %161 = arith.addf %159, %160 : vector<12x32xf32>
    %c64 = arith.constant 64 : index
    %c0_46 = arith.constant 0 : index
    %162 = vector.load %arg1[%c64, %c0_46] : memref<336x128xf32, #tpu.memory_space<vmem>>, vector<32x64xf32>
    %c166 = arith.constant 166 : index
    %c0_47 = arith.constant 0 : index
    %163 = vector.load %arg1[%c166, %c0_47] : memref<336x128xf32, #tpu.memory_space<vmem>>, vector<1x64xf32>
    %164 = arith.truncf %161 : vector<12x32xf32> to vector<12x32xbf16>
    %165 = arith.truncf %162 : vector<32x64xf32> to vector<32x64xbf16>
    %cst_48 = arith.constant dense<0.000000e+00> : vector<12x64xf32>
    %166 = tpu.matmul %164, %165, %cst_48 {dimension_numbers = #tpu.dot_dimension_numbers<[1], [0], [0], [1], [0, 0, 1, 1], [], []>} : vector<12x32xbf16>, vector<32x64xbf16>, vector<12x64xf32> -> vector<12x64xf32>
    %167 = vector.broadcast %163 : vector<1x64xf32> to vector<12x64xf32>
    %168 = arith.addf %166, %167 : vector<12x64xf32>
    %cst_49 = arith.constant 5.000000e-01 : f32
    %169 = vector.broadcast %cst_49 : f32 to vector<12x64xf32>
    %170 = arith.mulf %169, %168 : vector<12x64xf32>
    %cst_50 = arith.constant 0.707106769 : f32
    %171 = vector.broadcast %cst_50 : f32 to vector<12x64xf32>
    %172 = arith.mulf %168, %171 : vector<12x64xf32>
    %173 = math.erf %172 : vector<12x64xf32>
    %cst_51 = arith.constant 1.000000e+00 : f32
    %174 = vector.broadcast %cst_51 : f32 to vector<12x64xf32>
    %175 = arith.addf %174, %173 : vector<12x64xf32>
    %176 = arith.mulf %170, %175 : vector<12x64xf32>
    %c96 = arith.constant 96 : index
    %c0_52 = arith.constant 0 : index
    %177 = vector.load %arg1[%c96, %c0_52] : memref<336x128xf32, #tpu.memory_space<vmem>>, vector<64x32xf32>
    %c167 = arith.constant 167 : index
    %c0_53 = arith.constant 0 : index
    %178 = vector.load %arg1[%c167, %c0_53] : memref<336x128xf32, #tpu.memory_space<vmem>>, vector<1x32xf32>
    %179 = arith.truncf %176 : vector<12x64xf32> to vector<12x64xbf16>
    %180 = arith.truncf %177 : vector<64x32xf32> to vector<64x32xbf16>
    %cst_54 = arith.constant dense<0.000000e+00> : vector<12x32xf32>
    %181 = tpu.matmul %179, %180, %cst_54 {dimension_numbers = #tpu.dot_dimension_numbers<[1], [0], [0], [1], [0, 0, 1, 1], [], []>} : vector<12x64xbf16>, vector<64x32xbf16>, vector<12x32xf32> -> vector<12x32xf32>
    %182 = arith.addf %139, %181 : vector<12x32xf32>
    %183 = vector.broadcast %178 : vector<1x32xf32> to vector<12x32xf32>
    %184 = arith.addf %182, %183 : vector<12x32xf32>
    %c328 = arith.constant 328 : index
    %c0_55 = arith.constant 0 : index
    %185 = vector.load %arg1[%c328, %c0_55] : memref<336x128xf32, #tpu.memory_space<vmem>>, vector<1x32xf32>
    %c329 = arith.constant 329 : index
    %c0_56 = arith.constant 0 : index
    %186 = vector.load %arg1[%c329, %c0_56] : memref<336x128xf32, #tpu.memory_space<vmem>>, vector<1x32xf32>
    %cst_57 = arith.constant dense<0.000000e+00> : vector<12xf32>
    %187 = vector.multi_reduction <add>, %184, %cst_57 [1] : vector<12x32xf32> to vector<12xf32>
    %188 = vector.shape_cast %187 : vector<12xf32> to vector<12x1xf32>
    %cst_58 = arith.constant 3.200000e+01 : f32
    %189 = vector.broadcast %cst_58 : f32 to vector<12x1xf32>
    %190 = arith.divf %188, %189 : vector<12x1xf32>
    %191 = vector.broadcast %190 : vector<12x1xf32> to vector<12x32xf32>
    %192 = arith.subf %184, %191 : vector<12x32xf32>
    %193 = arith.mulf %192, %192 : vector<12x32xf32>
    %cst_59 = arith.constant dense<0.000000e+00> : vector<12xf32>
    %194 = vector.multi_reduction <add>, %193, %cst_59 [1] : vector<12x32xf32> to vector<12xf32>
    %195 = vector.shape_cast %194 : vector<12xf32> to vector<12x1xf32>
    %cst_60 = arith.constant 3.200000e+01 : f32
    %196 = vector.broadcast %cst_60 : f32 to vector<12x1xf32>
    %197 = arith.divf %195, %196 : vector<12x1xf32>
    %cst_61 = arith.constant 9.99999997E-7 : f32
    %198 = vector.broadcast %cst_61 : f32 to vector<12x1xf32>
    %199 = arith.addf %197, %198 : vector<12x1xf32>
    %200 = math.rsqrt %199 : vector<12x1xf32>
    %201 = vector.broadcast %200 : vector<12x1xf32> to vector<12x32xf32>
    %202 = arith.mulf %192, %201 : vector<12x32xf32>
    %203 = vector.broadcast %185 : vector<1x32xf32> to vector<12x32xf32>
    %204 = arith.mulf %202, %203 : vector<12x32xf32>
    %205 = vector.broadcast %186 : vector<1x32xf32> to vector<12x32xf32>
    %206 = arith.addf %204, %205 : vector<12x32xf32>
    %c168 = arith.constant 168 : index
    %c0_62 = arith.constant 0 : index
    %207 = vector.load %arg1[%c168, %c0_62] : memref<336x128xf32, #tpu.memory_space<vmem>>, vector<32x96xf32>
    %c332 = arith.constant 332 : index
    %c0_63 = arith.constant 0 : index
    %208 = vector.load %arg1[%c332, %c0_63] : memref<336x128xf32, #tpu.memory_space<vmem>>, vector<1x96xf32>
    %209 = arith.truncf %206 : vector<12x32xf32> to vector<12x32xbf16>
    %210 = arith.truncf %207 : vector<32x96xf32> to vector<32x96xbf16>
    %cst_64 = arith.constant dense<0.000000e+00> : vector<12x96xf32>
    %211 = tpu.matmul %209, %210, %cst_64 {dimension_numbers = #tpu.dot_dimension_numbers<[1], [0], [0], [1], [0, 0, 1, 1], [], []>} : vector<12x32xbf16>, vector<32x96xbf16>, vector<12x96xf32> -> vector<12x96xf32>
    %212 = vector.broadcast %208 : vector<1x96xf32> to vector<12x96xf32>
    %213 = arith.addf %211, %212 : vector<12x96xf32>
    %214 = vector.extract_strided_slice %213 {offsets = [0, 0], sizes = [12, 32], strides = [1, 1]} : vector<12x96xf32> to vector<12x32xf32>
    %215 = vector.extract_strided_slice %213 {offsets = [0, 32], sizes = [12, 32], strides = [1, 1]} : vector<12x96xf32> to vector<12x32xf32>
    %216 = vector.extract_strided_slice %213 {offsets = [0, 64], sizes = [12, 32], strides = [1, 1]} : vector<12x96xf32> to vector<12x32xf32>
    %217 = vector.extract_strided_slice %214 {offsets = [0, 0], sizes = [12, 8], strides = [1, 1]} : vector<12x32xf32> to vector<12x8xf32>
    %218 = arith.truncf %217 : vector<12x8xf32> to vector<12x8xbf16>
    %219 = vector.extract_strided_slice %215 {offsets = [0, 0], sizes = [12, 8], strides = [1, 1]} : vector<12x32xf32> to vector<12x8xf32>
    %220 = arith.truncf %219 : vector<12x8xf32> to vector<12x8xbf16>
    %221 = vector.extract_strided_slice %216 {offsets = [0, 0], sizes = [12, 8], strides = [1, 1]} : vector<12x32xf32> to vector<12x8xf32>
    %222 = arith.truncf %221 : vector<12x8xf32> to vector<12x8xbf16>
    %cst_65 = arith.constant dense<0.000000e+00> : vector<12x12xf32>
    %223 = tpu.matmul %218, %220, %cst_65 {dimension_numbers = #tpu.dot_dimension_numbers<[1], [1], [0], [0], [0, 0, 1, 0], [], []>} : vector<12x8xbf16>, vector<12x8xbf16>, vector<12x12xf32> -> vector<12x12xf32>
    %224 = arith.addf %223, %18 : vector<12x12xf32>
    %cst_66 = arith.constant dense<0xFF800000> : vector<12xf32>
    %225 = vector.multi_reduction <maximumf>, %224, %cst_66 [1] : vector<12x12xf32> to vector<12xf32>
    %226 = vector.shape_cast %225 : vector<12xf32> to vector<12x1xf32>
    %227 = vector.broadcast %226 : vector<12x1xf32> to vector<12x12xf32>
    %228 = arith.subf %224, %227 : vector<12x12xf32>
    %229 = math.exp %228 : vector<12x12xf32>
    %cst_67 = arith.constant dense<0.000000e+00> : vector<12xf32>
    %230 = vector.multi_reduction <add>, %229, %cst_67 [1] : vector<12x12xf32> to vector<12xf32>
    %231 = vector.shape_cast %230 : vector<12xf32> to vector<12x1xf32>
    %232 = tpu.reciprocal %231 {approx = true} : vector<12x1xf32> -> vector<12x1xf32>
    %233 = vector.broadcast %232 : vector<12x1xf32> to vector<12x12xf32>
    %234 = arith.mulf %229, %233 : vector<12x12xf32>
    %235 = arith.truncf %234 : vector<12x12xf32> to vector<12x12xbf16>
    %cst_68 = arith.constant dense<0.000000e+00> : vector<12x8xf32>
    %236 = tpu.matmul %235, %222, %cst_68 {dimension_numbers = #tpu.dot_dimension_numbers<[1], [0], [0], [1], [0, 0, 1, 1], [], []>} : vector<12x12xbf16>, vector<12x8xbf16>, vector<12x8xf32> -> vector<12x8xf32>
    %237 = vector.extract_strided_slice %214 {offsets = [0, 8], sizes = [12, 8], strides = [1, 1]} : vector<12x32xf32> to vector<12x8xf32>
    %238 = arith.truncf %237 : vector<12x8xf32> to vector<12x8xbf16>
    %239 = vector.extract_strided_slice %215 {offsets = [0, 8], sizes = [12, 8], strides = [1, 1]} : vector<12x32xf32> to vector<12x8xf32>
    %240 = arith.truncf %239 : vector<12x8xf32> to vector<12x8xbf16>
    %241 = vector.extract_strided_slice %216 {offsets = [0, 8], sizes = [12, 8], strides = [1, 1]} : vector<12x32xf32> to vector<12x8xf32>
    %242 = arith.truncf %241 : vector<12x8xf32> to vector<12x8xbf16>
    %cst_69 = arith.constant dense<0.000000e+00> : vector<12x12xf32>
    %243 = tpu.matmul %238, %240, %cst_69 {dimension_numbers = #tpu.dot_dimension_numbers<[1], [1], [0], [0], [0, 0, 1, 0], [], []>} : vector<12x8xbf16>, vector<12x8xbf16>, vector<12x12xf32> -> vector<12x12xf32>
    %244 = arith.addf %243, %18 : vector<12x12xf32>
    %cst_70 = arith.constant dense<0xFF800000> : vector<12xf32>
    %245 = vector.multi_reduction <maximumf>, %244, %cst_70 [1] : vector<12x12xf32> to vector<12xf32>
    %246 = vector.shape_cast %245 : vector<12xf32> to vector<12x1xf32>
    %247 = vector.broadcast %246 : vector<12x1xf32> to vector<12x12xf32>
    %248 = arith.subf %244, %247 : vector<12x12xf32>
    %249 = math.exp %248 : vector<12x12xf32>
    %cst_71 = arith.constant dense<0.000000e+00> : vector<12xf32>
    %250 = vector.multi_reduction <add>, %249, %cst_71 [1] : vector<12x12xf32> to vector<12xf32>
    %251 = vector.shape_cast %250 : vector<12xf32> to vector<12x1xf32>
    %252 = tpu.reciprocal %251 {approx = true} : vector<12x1xf32> -> vector<12x1xf32>
    %253 = vector.broadcast %252 : vector<12x1xf32> to vector<12x12xf32>
    %254 = arith.mulf %249, %253 : vector<12x12xf32>
    %255 = arith.truncf %254 : vector<12x12xf32> to vector<12x12xbf16>
    %cst_72 = arith.constant dense<0.000000e+00> : vector<12x8xf32>
    %256 = tpu.matmul %255, %242, %cst_72 {dimension_numbers = #tpu.dot_dimension_numbers<[1], [0], [0], [1], [0, 0, 1, 1], [], []>} : vector<12x12xbf16>, vector<12x8xbf16>, vector<12x8xf32> -> vector<12x8xf32>
    %257 = vector.extract_strided_slice %214 {offsets = [0, 16], sizes = [12, 8], strides = [1, 1]} : vector<12x32xf32> to vector<12x8xf32>
    %258 = arith.truncf %257 : vector<12x8xf32> to vector<12x8xbf16>
    %259 = vector.extract_strided_slice %215 {offsets = [0, 16], sizes = [12, 8], strides = [1, 1]} : vector<12x32xf32> to vector<12x8xf32>
    %260 = arith.truncf %259 : vector<12x8xf32> to vector<12x8xbf16>
    %261 = vector.extract_strided_slice %216 {offsets = [0, 16], sizes = [12, 8], strides = [1, 1]} : vector<12x32xf32> to vector<12x8xf32>
    %262 = arith.truncf %261 : vector<12x8xf32> to vector<12x8xbf16>
    %cst_73 = arith.constant dense<0.000000e+00> : vector<12x12xf32>
    %263 = tpu.matmul %258, %260, %cst_73 {dimension_numbers = #tpu.dot_dimension_numbers<[1], [1], [0], [0], [0, 0, 1, 0], [], []>} : vector<12x8xbf16>, vector<12x8xbf16>, vector<12x12xf32> -> vector<12x12xf32>
    %264 = arith.addf %263, %18 : vector<12x12xf32>
    %cst_74 = arith.constant dense<0xFF800000> : vector<12xf32>
    %265 = vector.multi_reduction <maximumf>, %264, %cst_74 [1] : vector<12x12xf32> to vector<12xf32>
    %266 = vector.shape_cast %265 : vector<12xf32> to vector<12x1xf32>
    %267 = vector.broadcast %266 : vector<12x1xf32> to vector<12x12xf32>
    %268 = arith.subf %264, %267 : vector<12x12xf32>
    %269 = math.exp %268 : vector<12x12xf32>
    %cst_75 = arith.constant dense<0.000000e+00> : vector<12xf32>
    %270 = vector.multi_reduction <add>, %269, %cst_75 [1] : vector<12x12xf32> to vector<12xf32>
    %271 = vector.shape_cast %270 : vector<12xf32> to vector<12x1xf32>
    %272 = tpu.reciprocal %271 {approx = true} : vector<12x1xf32> -> vector<12x1xf32>
    %273 = vector.broadcast %272 : vector<12x1xf32> to vector<12x12xf32>
    %274 = arith.mulf %269, %273 : vector<12x12xf32>
    %275 = arith.truncf %274 : vector<12x12xf32> to vector<12x12xbf16>
    %cst_76 = arith.constant dense<0.000000e+00> : vector<12x8xf32>
    %276 = tpu.matmul %275, %262, %cst_76 {dimension_numbers = #tpu.dot_dimension_numbers<[1], [0], [0], [1], [0, 0, 1, 1], [], []>} : vector<12x12xbf16>, vector<12x8xbf16>, vector<12x8xf32> -> vector<12x8xf32>
    %277 = vector.extract_strided_slice %214 {offsets = [0, 24], sizes = [12, 8], strides = [1, 1]} : vector<12x32xf32> to vector<12x8xf32>
    %278 = arith.truncf %277 : vector<12x8xf32> to vector<12x8xbf16>
    %279 = vector.extract_strided_slice %215 {offsets = [0, 24], sizes = [12, 8], strides = [1, 1]} : vector<12x32xf32> to vector<12x8xf32>
    %280 = arith.truncf %279 : vector<12x8xf32> to vector<12x8xbf16>
    %281 = vector.extract_strided_slice %216 {offsets = [0, 24], sizes = [12, 8], strides = [1, 1]} : vector<12x32xf32> to vector<12x8xf32>
    %282 = arith.truncf %281 : vector<12x8xf32> to vector<12x8xbf16>
    %cst_77 = arith.constant dense<0.000000e+00> : vector<12x12xf32>
    %283 = tpu.matmul %278, %280, %cst_77 {dimension_numbers = #tpu.dot_dimension_numbers<[1], [1], [0], [0], [0, 0, 1, 0], [], []>} : vector<12x8xbf16>, vector<12x8xbf16>, vector<12x12xf32> -> vector<12x12xf32>
    %284 = arith.addf %283, %18 : vector<12x12xf32>
    %cst_78 = arith.constant dense<0xFF800000> : vector<12xf32>
    %285 = vector.multi_reduction <maximumf>, %284, %cst_78 [1] : vector<12x12xf32> to vector<12xf32>
    %286 = vector.shape_cast %285 : vector<12xf32> to vector<12x1xf32>
    %287 = vector.broadcast %286 : vector<12x1xf32> to vector<12x12xf32>
    %288 = arith.subf %284, %287 : vector<12x12xf32>
    %289 = math.exp %288 : vector<12x12xf32>
    %cst_79 = arith.constant dense<0.000000e+00> : vector<12xf32>
    %290 = vector.multi_reduction <add>, %289, %cst_79 [1] : vector<12x12xf32> to vector<12xf32>
    %291 = vector.shape_cast %290 : vector<12xf32> to vector<12x1xf32>
    %292 = tpu.reciprocal %291 {approx = true} : vector<12x1xf32> -> vector<12x1xf32>
    %293 = vector.broadcast %292 : vector<12x1xf32> to vector<12x12xf32>
    %294 = arith.mulf %289, %293 : vector<12x12xf32>
    %295 = arith.truncf %294 : vector<12x12xf32> to vector<12x12xbf16>
    %cst_80 = arith.constant dense<0.000000e+00> : vector<12x8xf32>
    %296 = tpu.matmul %295, %282, %cst_80 {dimension_numbers = #tpu.dot_dimension_numbers<[1], [0], [0], [1], [0, 0, 1, 1], [], []>} : vector<12x12xbf16>, vector<12x8xbf16>, vector<12x8xf32> -> vector<12x8xf32>
    %297 = tpu.concatenate %236, %256, %276, %296 in 1 : vector<12x8xf32>, vector<12x8xf32>, vector<12x8xf32>, vector<12x8xf32> -> vector<12x32xf32>
    %c200 = arith.constant 200 : index
    %c0_81 = arith.constant 0 : index
    %298 = vector.load %arg1[%c200, %c0_81] : memref<336x128xf32, #tpu.memory_space<vmem>>, vector<32x32xf32>
    %c333 = arith.constant 333 : index
    %c0_82 = arith.constant 0 : index
    %299 = vector.load %arg1[%c333, %c0_82] : memref<336x128xf32, #tpu.memory_space<vmem>>, vector<1x32xf32>
    %300 = arith.truncf %297 : vector<12x32xf32> to vector<12x32xbf16>
    %301 = arith.truncf %298 : vector<32x32xf32> to vector<32x32xbf16>
    %cst_83 = arith.constant dense<0.000000e+00> : vector<12x32xf32>
    %302 = tpu.matmul %300, %301, %cst_83 {dimension_numbers = #tpu.dot_dimension_numbers<[1], [0], [0], [1], [0, 0, 1, 1], [], []>} : vector<12x32xbf16>, vector<32x32xbf16>, vector<12x32xf32> -> vector<12x32xf32>
    %303 = arith.addf %184, %302 : vector<12x32xf32>
    %304 = vector.broadcast %299 : vector<1x32xf32> to vector<12x32xf32>
    %305 = arith.addf %303, %304 : vector<12x32xf32>
    %c330 = arith.constant 330 : index
    %c0_84 = arith.constant 0 : index
    %306 = vector.load %arg1[%c330, %c0_84] : memref<336x128xf32, #tpu.memory_space<vmem>>, vector<1x32xf32>
    %c331 = arith.constant 331 : index
    %c0_85 = arith.constant 0 : index
    %307 = vector.load %arg1[%c331, %c0_85] : memref<336x128xf32, #tpu.memory_space<vmem>>, vector<1x32xf32>
    %cst_86 = arith.constant dense<0.000000e+00> : vector<12xf32>
    %308 = vector.multi_reduction <add>, %305, %cst_86 [1] : vector<12x32xf32> to vector<12xf32>
    %309 = vector.shape_cast %308 : vector<12xf32> to vector<12x1xf32>
    %cst_87 = arith.constant 3.200000e+01 : f32
    %310 = vector.broadcast %cst_87 : f32 to vector<12x1xf32>
    %311 = arith.divf %309, %310 : vector<12x1xf32>
    %312 = vector.broadcast %311 : vector<12x1xf32> to vector<12x32xf32>
    %313 = arith.subf %305, %312 : vector<12x32xf32>
    %314 = arith.mulf %313, %313 : vector<12x32xf32>
    %cst_88 = arith.constant dense<0.000000e+00> : vector<12xf32>
    %315 = vector.multi_reduction <add>, %314, %cst_88 [1] : vector<12x32xf32> to vector<12xf32>
    %316 = vector.shape_cast %315 : vector<12xf32> to vector<12x1xf32>
    %cst_89 = arith.constant 3.200000e+01 : f32
    %317 = vector.broadcast %cst_89 : f32 to vector<12x1xf32>
    %318 = arith.divf %316, %317 : vector<12x1xf32>
    %cst_90 = arith.constant 9.99999997E-7 : f32
    %319 = vector.broadcast %cst_90 : f32 to vector<12x1xf32>
    %320 = arith.addf %318, %319 : vector<12x1xf32>
    %321 = math.rsqrt %320 : vector<12x1xf32>
    %322 = vector.broadcast %321 : vector<12x1xf32> to vector<12x32xf32>
    %323 = arith.mulf %313, %322 : vector<12x32xf32>
    %324 = vector.broadcast %306 : vector<1x32xf32> to vector<12x32xf32>
    %325 = arith.mulf %323, %324 : vector<12x32xf32>
    %326 = vector.broadcast %307 : vector<1x32xf32> to vector<12x32xf32>
    %327 = arith.addf %325, %326 : vector<12x32xf32>
    %c232 = arith.constant 232 : index
    %c0_91 = arith.constant 0 : index
    %328 = vector.load %arg1[%c232, %c0_91] : memref<336x128xf32, #tpu.memory_space<vmem>>, vector<32x64xf32>
    %c334 = arith.constant 334 : index
    %c0_92 = arith.constant 0 : index
    %329 = vector.load %arg1[%c334, %c0_92] : memref<336x128xf32, #tpu.memory_space<vmem>>, vector<1x64xf32>
    %330 = arith.truncf %327 : vector<12x32xf32> to vector<12x32xbf16>
    %331 = arith.truncf %328 : vector<32x64xf32> to vector<32x64xbf16>
    %cst_93 = arith.constant dense<0.000000e+00> : vector<12x64xf32>
    %332 = tpu.matmul %330, %331, %cst_93 {dimension_numbers = #tpu.dot_dimension_numbers<[1], [0], [0], [1], [0, 0, 1, 1], [], []>} : vector<12x32xbf16>, vector<32x64xbf16>, vector<12x64xf32> -> vector<12x64xf32>
    %333 = vector.broadcast %329 : vector<1x64xf32> to vector<12x64xf32>
    %334 = arith.addf %332, %333 : vector<12x64xf32>
    %cst_94 = arith.constant 5.000000e-01 : f32
    %335 = vector.broadcast %cst_94 : f32 to vector<12x64xf32>
    %336 = arith.mulf %335, %334 : vector<12x64xf32>
    %cst_95 = arith.constant 0.707106769 : f32
    %337 = vector.broadcast %cst_95 : f32 to vector<12x64xf32>
    %338 = arith.mulf %334, %337 : vector<12x64xf32>
    %339 = math.erf %338 : vector<12x64xf32>
    %cst_96 = arith.constant 1.000000e+00 : f32
    %340 = vector.broadcast %cst_96 : f32 to vector<12x64xf32>
    %341 = arith.addf %340, %339 : vector<12x64xf32>
    %342 = arith.mulf %336, %341 : vector<12x64xf32>
    %c264 = arith.constant 264 : index
    %c0_97 = arith.constant 0 : index
    %343 = vector.load %arg1[%c264, %c0_97] : memref<336x128xf32, #tpu.memory_space<vmem>>, vector<64x32xf32>
    %c335 = arith.constant 335 : index
    %c0_98 = arith.constant 0 : index
    %344 = vector.load %arg1[%c335, %c0_98] : memref<336x128xf32, #tpu.memory_space<vmem>>, vector<1x32xf32>
    %345 = arith.truncf %342 : vector<12x64xf32> to vector<12x64xbf16>
    %346 = arith.truncf %343 : vector<64x32xf32> to vector<64x32xbf16>
    %cst_99 = arith.constant dense<0.000000e+00> : vector<12x32xf32>
    %347 = tpu.matmul %345, %346, %cst_99 {dimension_numbers = #tpu.dot_dimension_numbers<[1], [0], [0], [1], [0, 0, 1, 1], [], []>} : vector<12x64xbf16>, vector<64x32xbf16>, vector<12x32xf32> -> vector<12x32xf32>
    %348 = arith.addf %305, %347 : vector<12x32xf32>
    %349 = vector.broadcast %344 : vector<1x32xf32> to vector<12x32xf32>
    %350 = arith.addf %348, %349 : vector<12x32xf32>
    %c200_100 = arith.constant 200 : index
    %c0_101 = arith.constant 0 : index
    %351 = vector.load %arg2[%c200_100, %c0_101] : memref<248x128xf32, #tpu.memory_space<vmem>>, vector<1x32xf32>
    %c201 = arith.constant 201 : index
    %c0_102 = arith.constant 0 : index
    %352 = vector.load %arg2[%c201, %c0_102] : memref<248x128xf32, #tpu.memory_space<vmem>>, vector<1x32xf32>
    %cst_103 = arith.constant dense<0.000000e+00> : vector<12xf32>
    %353 = vector.multi_reduction <add>, %350, %cst_103 [1] : vector<12x32xf32> to vector<12xf32>
    %354 = vector.shape_cast %353 : vector<12xf32> to vector<12x1xf32>
    %cst_104 = arith.constant 3.200000e+01 : f32
    %355 = vector.broadcast %cst_104 : f32 to vector<12x1xf32>
    %356 = arith.divf %354, %355 : vector<12x1xf32>
    %357 = vector.broadcast %356 : vector<12x1xf32> to vector<12x32xf32>
    %358 = arith.subf %350, %357 : vector<12x32xf32>
    %359 = arith.mulf %358, %358 : vector<12x32xf32>
    %cst_105 = arith.constant dense<0.000000e+00> : vector<12xf32>
    %360 = vector.multi_reduction <add>, %359, %cst_105 [1] : vector<12x32xf32> to vector<12xf32>
    %361 = vector.shape_cast %360 : vector<12xf32> to vector<12x1xf32>
    %cst_106 = arith.constant 3.200000e+01 : f32
    %362 = vector.broadcast %cst_106 : f32 to vector<12x1xf32>
    %363 = arith.divf %361, %362 : vector<12x1xf32>
    %cst_107 = arith.constant 9.99999997E-7 : f32
    %364 = vector.broadcast %cst_107 : f32 to vector<12x1xf32>
    %365 = arith.addf %363, %364 : vector<12x1xf32>
    %366 = math.rsqrt %365 : vector<12x1xf32>
    %367 = vector.broadcast %366 : vector<12x1xf32> to vector<12x32xf32>
    %368 = arith.mulf %358, %367 : vector<12x32xf32>
    %369 = vector.broadcast %351 : vector<1x32xf32> to vector<12x32xf32>
    %370 = arith.mulf %368, %369 : vector<12x32xf32>
    %371 = vector.broadcast %352 : vector<1x32xf32> to vector<12x32xf32>
    %372 = arith.addf %370, %371 : vector<12x32xf32>
    %373 = vector.extract_strided_slice %372 {offsets = [0, 0], sizes = [1, 32], strides = [1, 1]} : vector<12x32xf32> to vector<1x32xf32>
    %374 = vector.extract_strided_slice %372 {offsets = [1, 0], sizes = [1, 32], strides = [1, 1]} : vector<12x32xf32> to vector<1x32xf32>
    %375 = arith.addf %373, %374 : vector<1x32xf32>
    %cst_108 = arith.constant 5.000000e-01 : f32
    %376 = vector.broadcast %cst_108 : f32 to vector<1x32xf32>
    %377 = arith.mulf %376, %375 : vector<1x32xf32>
    %378 = vector.extract_strided_slice %372 {offsets = [6, 0], sizes = [1, 32], strides = [1, 1]} : vector<12x32xf32> to vector<1x32xf32>
    %379 = vector.extract_strided_slice %372 {offsets = [7, 0], sizes = [1, 32], strides = [1, 1]} : vector<12x32xf32> to vector<1x32xf32>
    %380 = arith.addf %378, %379 : vector<1x32xf32>
    %cst_109 = arith.constant 5.000000e-01 : f32
    %381 = vector.broadcast %cst_109 : f32 to vector<1x32xf32>
    %382 = arith.mulf %381, %380 : vector<1x32xf32>
    %383 = tpu.concatenate %377, %382 in 0 : vector<1x32xf32>, vector<1x32xf32> -> vector<2x32xf32>
    %c202 = arith.constant 202 : index
    %c0_110 = arith.constant 0 : index
    %384 = vector.load %arg2[%c202, %c0_110] : memref<248x128xf32, #tpu.memory_space<vmem>>, vector<32x128xf32>
    %c234 = arith.constant 234 : index
    %c0_111 = arith.constant 0 : index
    %385 = vector.load %arg2[%c234, %c0_111] : memref<248x128xf32, #tpu.memory_space<vmem>>, vector<1x128xf32>
    %386 = arith.truncf %383 : vector<2x32xf32> to vector<2x32xbf16>
    %387 = arith.truncf %384 : vector<32x128xf32> to vector<32x128xbf16>
    %cst_112 = arith.constant dense<0.000000e+00> : vector<2x128xf32>
    %388 = tpu.matmul %386, %387, %cst_112 {dimension_numbers = #tpu.dot_dimension_numbers<[1], [0], [0], [1], [0, 0, 1, 1], [], []>} : vector<2x32xbf16>, vector<32x128xbf16>, vector<2x128xf32> -> vector<2x128xf32>
    %389 = vector.broadcast %385 : vector<1x128xf32> to vector<2x128xf32>
    %390 = arith.addf %388, %389 : vector<2x128xf32>
    %cst_113 = arith.constant 0.000000e+00 : f32
    %391 = vector.broadcast %cst_113 : f32 to vector<2x96xf32>
    %392 = tpu.concatenate %383, %391 in 1 : vector<2x32xf32>, vector<2x96xf32> -> vector<2x128xf32>
    %393 = tpu.concatenate %390, %392 in 0 : vector<2x128xf32>, vector<2x128xf32> -> vector<4x128xf32>
    %c0_114 = arith.constant 0 : index
    %c0_115 = arith.constant 0 : index
    %394 = vector.load %arg3[%c0_114, %c0_115] : memref<4x128xf32, #tpu.memory_space<vmem>>, vector<4x128xf32>
    tpu.vector_store %arg3[%c0_114, %c0_115], %393 {strides = array<i32>} : memref<4x128xf32, #tpu.memory_space<vmem>>, vector<4x128xf32>,
    return
  }
}

</mosaic_0001>

<llo_original>
// kernel: _forward_impl.1
$region0: #{_forward_impl.1}
  #allocation0 [shape = 'u32[]', space=smem, size = 0x4, offset = 0x4, fixed_abs, tag = 'smem constant byte address 0x4 - core index']
  #allocation1 [shape = 'u32[72,128]{1,0:T(1,128)}', space=vmem, size = 0x9000, scoped, tag = 'internal scratch']
  %s0 = inlined_call_operand.vmem [shape: f32[8,192], index: 0, kind: input, shape index: {}]
  %s1 = inlined_call_operand.vmem [shape: f32[336,128], index: 1, kind: input, shape index: {}]
  %s2 = inlined_call_operand.vmem [shape: f32[248,128], index: 2, kind: input, shape index: {}]
  %s3 = inlined_call_operand.vmem [shape: f32[4,128], index: 3, kind: output, shape index: {}]
  %s4 = sld [smem:[#allocation0]]
  $region22: #{_forward_impl.1} parent=0
    _
  %s6 = ssub.s32 1, %s4
  %s7 = scalar_select 0, %s6, %s4
  // Predicated region
  $region2: #{_forward_impl.1} parent=0 // pred_check
    _
  $region3: #{_forward_impl.1} parent=0 // pred_check_branch
    %9 = sbr.rel (0) target = $region5
  $region4: #{_forward_impl.1} parent=0 // pred_region
    _
  $region5: #{_forward_impl.1} parent=0 // pred_fallthru
    _
  // Predicated region
  $region6: #{_forward_impl.1} parent=0 // pred_check
    _
  $region7: #{_forward_impl.1} parent=0 // pred_check_branch
    %11 = sbr.rel (0) target = $region9
  $region8: #{_forward_impl.1} parent=0 // pred_region
    _
  $region9: #{_forward_impl.1} parent=0 // pred_fallthru
    _
  // Predicated region
  $region10: #{_forward_impl.1} parent=0 // pred_check
    _
  $region11: #{_forward_impl.1} parent=0 // pred_check_branch
    %13 = sbr.rel (0) target = $region13
  $region12: #{_forward_impl.1} parent=0 // pred_region
    _
  $region13: #{_forward_impl.1} parent=0 // pred_fallthru
    _
  %v15 = vld [vmem:[%s2] sm:$0xff]
  %v16 = vld [vmem:[%s2 + $0x8] sm:$0xff]
  %v17 = vld [vmem:[%s2 + $0x10] sm:$0xff]
  %v18 = vld [vmem:[%s2 + $0x18] sm:$0xff]
  %v19 = vld [vmem:[%s2 + $0x20] sm:$0xff]
  %v20 = vld [vmem:[%s2 + $0x28] sm:$0xff]
  %v21 = vld [vmem:[%s2 + $0x30] sm:$0xff]
  %v22 = vld [vmem:[%s2 + $0x38] sm:$0xff]
  %v23 = vld [vmem:[%s2 + $0x40] sm:$0xff]
  %v24 = vld [vmem:[%s2 + $0x48] sm:$0xff]
  %v25 = vld [vmem:[%s2 + $0x50] sm:$0xff]
  %v26 = vld [vmem:[%s2 + $0x58] sm:$0xff]
  %v27 = vld [vmem:[%s2 + $0x60] sm:$0xff]
  %v28 = vld [vmem:[%s2 + $0x68] sm:$0xff]
  %v29 = vld [vmem:[%s2 + $0x70] sm:$0xff]
  %v30 = vld [vmem:[%s2 + $0x78] sm:$0xff]
  %v31 = vld [vmem:[%s2 + $0x80] sm:$0xff]
  %v32 = vld [vmem:[%s2 + $0x88] sm:$0xff]
  %v33 = vld [vmem:[%s2 + $0x90] sm:$0xff]
  %v34 = vld [vmem:[%s2 + $0x98] sm:$0xff]
  %v35 = vld [vmem:[%s2 + $0xa0] sm:$0xff]
  %v36 = vld [vmem:[%s2 + $0xa8] sm:$0xff]
  %v37 = vld [vmem:[%s2 + $0xb0] sm:$0xff]
  %v38 = vld [vmem:[%s2 + $0xb8] sm:$0xff]
  %v39 = vld [vmem:[%s2 + $0xc0] sm:$0x1]
  %v40 = vld [vmem:[%s0] sm:$0xff]
  %v41 = vld [vmem:[%s0 + $0x8] sm:$0xff]
  %v42 = vpack.c.bf16 %v40, %v40
  %v43 = vpack.c.bf16 %v41, %v41
  %v44 = vpack.c.bf16 %v16, %v15
  %v45 = vpack.c.bf16 %v18, %v17
  %v46 = vpack.c.bf16 %v20, %v19
  %v47 = vpack.c.bf16 %v22, %v21
  %v48 = vpack.c.bf16 %v24, %v23
  %v49 = vpack.c.bf16 %v26, %v25
  %v50 = vpack.c.bf16 %v28, %v27
  %v51 = vpack.c.bf16 %v30, %v29
  %v52 = vpack.c.bf16 %v32, %v31
  %v53 = vpack.c.bf16 %v34, %v33
  %v54 = vpack.c.bf16 %v36, %v35
  %v55 = vpack.c.bf16 %v38, %v37
  %v56 = vperm.slane %v39, 0
  %vm57 = vcmask 523264
  %v59 = vsel %vm57, %v43, 0
  %61 = vmatpush.bf16.msra.mxu0 %v51
  %62 = vmatpush.bf16.msra.mxu0 %v50
  %63 = vmatpush.bf16.msra.mxu0 %v49
  %64 = vmatpush.bf16.msra.mxu0 %v48
  %65 = vmatpush.bf16.msra.mxu0 %v47
  %66 = vmatpush.bf16.msra.mxu0 %v46
  %67 = vmatpush.bf16.msra.mxu0 %v45
  %68 = vmatpush.bf16.msra.mxu0 %v44
  %69 = vmatmul.bf16.gmra.mxu0 %v42
  %v70 = vpop.f32.mrf.mxu0
  %v71 = vadd.f32 %v56, %v70
  %v72 = vpop.f32.mrf.mxu0
  %73 = vdwg.mxu0
  %74 = vmatpush.bf16.msra.mxu0 0
  %75 = vmatpush.bf16.msra.mxu0 0
  %76 = vmatpush.bf16.msra.mxu0 0
  %77 = vmatpush.bf16.msra.mxu0 0
  %78 = vmatpush.bf16.msra.mxu0 %v55
  %79 = vmatpush.bf16.msra.mxu0 %v54
  %80 = vmatpush.bf16.msra.mxu0 %v53
  %81 = vmatpush.bf16.msra.mxu0 %v52
  %82 = vmatmul.bf16.gmra.mxu0 %v59
  %v83 = vpop.f32.mrf.mxu0
  %v84 = vadd.f32 %v71, %v83
  %v85 = vpop.f32.mrf.mxu0
  %86 = vdwg.mxu0
  %v87 = vld [vmem:[%s2 + $0xc1] sm:$0x1]
  %v88 = vld [vmem:[%s2 + $0xc3] sm:$0x1]
  %v89 = vadd.f32 %v87, %v88
  %v90 = vld [vmem:[%s2 + $0xc2] sm:$0x1]
  %v91 = vld [vmem:[%s2 + $0xc4] sm:$0xf]
  %v92 = vadd.f32 %v84, %v91
  %v94 = vrot.slane %v91, 4
  %v96 = vadd.f32 %v84, %v94
  %v98 = vrot.slane %v90, 7
  %v101 = vrot.slane %v92, 6
  %v104 = vrot.slane %v89, 2
  %v106 = vrot.slane %v90, 1
  %v109 = vrot.slane %v96, 4
  %vm111 = vcmask 1040384
  %v112 = vsel %vm111, %v89, %v98
  %vm113 = vcmask 1041408
  %v114 = vsel %vm113, %v112, %v101
  %vm115 = vcmask 1045504
  %v116 = vsel %vm115, %v114, %v104
  %vm117 = vcmask 1046528
  %v118 = vsel %vm117, %v116, %v106
  %v119 = vld [vmem:[%s2 + $0xeb] sm:$0xff]
  %v120 = vld [vmem:[%s2 + $0xf3] sm:$0xf]
  %v121 = vld [vmem:[%s1 + $0xa0] sm:$0x1]
  %v122 = vld [vmem:[%s1 + $0xa1] sm:$0x1]
  %vm123 = vcmask 261120
  %v124 = vsel %vm123, %v118, 0.0
  %125 = vadd.xlane.f32.xlu0 %v124
  %v126 = vpop.xlane.xlu0 %125
  %vm127 = vcmask 257024
  %v128 = vsel %vm127, %v109, 0.0
  %129 = vadd.xlane.f32.xlu0 %v128
  %v130 = vpop.xlane.xlu0 %129
  %v131 = vrcp.pop 32.0
  %v132 = vmul.f32 32.0, %v131
  %v133 = vsub.f32 1.0, %v132
  %v134 = vmul.f32 %v131, %v133
  %v135 = vadd.f32 %v131, %v134
  %vm136 = vweird.f32 %v131
  %v137 = vsel %vm136, %v131, %v135
  %v138 = vmul.f32 %v126, %v137
  %v139 = vmul.f32 %v130, %v137
  %v140 = vsub.f32 %v118, %v138
  %v141 = vsub.f32 %v109, %v139
  %v142 = vmul.f32 %v140, %v140
  %v143 = vmul.f32 %v141, %v141
  %v144 = vsel %vm123, %v142, 0.0
  %145 = vadd.xlane.f32.xlu0 %v144
  %v146 = vpop.xlane.xlu0 %145
  %v147 = vsel %vm127, %v143, 0.0
  %148 = vadd.xlane.f32.xlu0 %v147
  %v149 = vpop.xlane.xlu0 %148
  %v150 = vmul.f32 %v146, %v137
  %v151 = vmul.f32 %v149, %v137
  %v152 = vadd.f32 %v150, 1e-06
  %v153 = vadd.f32 %v151, 1e-06
  %v154 = vrsqrt.pop %v152
  %v155 = vmul.f32 %v154, %v152
  %v156 = vmul.f32 %v155, %v154
  %v157 = vmul.f32 0.5, %v156
  %v158 = vsub.f32 1.5, %v157
  %v159 = vmul.f32 %v154, %v158
  %vm160 = vweird.f32 %v152
  %vm161 = vweird.f32 %v154
  %vm162 = vmor %vm160, %vm161
  %v163 = vsel %vm162, %v154, %v159
  %v164 = vrsqrt.pop %v153
  %v165 = vmul.f32 %v164, %v153
  %v166 = vmul.f32 %v165, %v164
  %v167 = vmul.f32 0.5, %v166
  %v168 = vsub.f32 1.5, %v167
  %v169 = vmul.f32 %v164, %v168
  %vm170 = vweird.f32 %v153
  %vm171 = vweird.f32 %v164
  %vm172 = vmor %vm170, %vm171
  %v173 = vsel %vm172, %v164, %v169
  %v174 = vmul.f32 %v140, %v163
  %v175 = vmul.f32 %v141, %v173
  %v176 = vperm.slane %v121, 0
  %v177 = vmul.f32 %v174, %v176
  %v178 = vmul.f32 %v175, %v176
  %v179 = vperm.slane %v122, 0
  %v180 = vadd.f32 %v177, %v179
  %v181 = vadd.f32 %v178, %v179
  %v182 = vld [vmem:[%s1] sm:$0xff]
  %v183 = vld [vmem:[%s1 + $0x8] sm:$0xff]
  %v184 = vld [vmem:[%s1 + $0x10] sm:$0xff]
  %v185 = vld [vmem:[%s1 + $0x18] sm:$0xff]
  %v186 = vld [vmem:[%s1 + $0xa4] sm:$0x1]
  %v187 = vpack.c.bf16 %v181, %v180
  %v188 = vpack.c.bf16 %v183, %v182
  %v189 = vpack.c.bf16 %v185, %v184
  %v190 = vperm.slane %v186, 0
  %v192 = vsel %vm123, %v187, 0
  %194 = vmatpush.bf16.msra.mxu0 0
  %195 = vmatpush.bf16.msra.mxu0 0
  %196 = vmatpush.bf16.msra.mxu0 0
  %197 = vmatpush.bf16.msra.mxu0 0
  %198 = vmatpush.bf16.msra.mxu0 0
  %199 = vmatpush.bf16.msra.mxu0 0
  %200 = vmatpush.bf16.msra.mxu0 %v189
  %201 = vmatpush.bf16.msra.mxu0 %v188
  %202 = vmatmul.bf16.gmra.mxu0 %v192
  %v203 = vpop.f32.mrf.mxu0
  %v204 = vadd.f32 %v190, %v203
  %v205 = vpop.f32.mrf.mxu0
  %v206 = vadd.f32 %v190, %v205
  %207 = vdwg.mxu0
  %v208 = vpack.c.bf16 %v206, %v204
  %210 = vrot.lane.b32.xlu0 %v208, 96
  %v211 = vpop.permute.xlu0 %210
  %vm212 = vcmask 64512
  %v214 = vsel %vm212, %v208, 0
  %v217 = vsel %vm212, %v211, 0
  %219 = vmatpush.bf16.xpose.msra.mxu0 0
  %220 = vmatpush.bf16.xpose.msra.mxu0 0
  %221 = vmatpush.bf16.xpose.msra.mxu0 0
  %222 = vmatpush.bf16.xpose.msra.mxu0 0
  %223 = vmatpush.bf16.xpose.msra.mxu0 0
  %224 = vmatpush.bf16.xpose.msra.mxu0 0
  %225 = vmatpush.bf16.xpose.msra.mxu0 0
  %226 = vmatpush.bf16.xpose.msra.mxu0 %v217
  %227 = vmatmul.bf16.gmra.mxu0 %v214
  %v228 = vpop.f32.mrf.mxu0
  %v229 = vadd.f32 %v119, %v228
  %v230 = vpop.f32.mrf.mxu0
  %v231 = vadd.f32 %v120, %v230
  %232 = vdwg.mxu0
  %vm233 = vcmask 97280
  %v234 = vsel %vm233, %v229, -inf
  %235 = vmax.xlane.f32.xlu0 %v234
  %v236 = vpop.xlane.xlu0 %235
  %vm237 = vcmask 93184
  %v238 = vsel %vm237, %v231, -inf
  %239 = vmax.xlane.f32.xlu0 %v238
  %v240 = vpop.xlane.xlu0 %239
  %v241 = vsub.f32 %v229, %v236
  %v242 = vsub.f32 %v231, %v240
  %v243 = vmul.f32 %v241, 1.442695
  %v244 = vpow.pop %v243
  %v245 = vmul.f32 %v242, 1.442695
  %v246 = vpow.pop %v245
  %v247 = vsel %vm233, %v244, 0.0
  %248 = vadd.xlane.f32.xlu0 %v247
  %v249 = vpop.xlane.xlu0 %248
  %v250 = vsel %vm237, %v246, 0.0
  %251 = vadd.xlane.f32.xlu0 %v250
  %v252 = vpop.xlane.xlu0 %251
  %v253 = vrcp.pop %v249
  %v254 = vrcp.pop %v252
  %v255 = vmul.f32 %v244, %v253
  %v256 = vmul.f32 %v246, %v254
  %v257 = vpack.c.bf16 %v256, %v255
  %258 = vrot.lane.b32.xlu0 %v208, 64
  %v259 = vpop.permute.xlu0 %258
  %v261 = vsel %vm233, %v257, 0
  %v264 = vsel %vm115, %v259, 0
  %266 = vmatpush.bf16.msra.mxu0 0
  %267 = vmatpush.bf16.msra.mxu0 0
  %268 = vmatpush.bf16.msra.mxu0 0
  %269 = vmatpush.bf16.msra.mxu0 0
  %270 = vmatpush.bf16.msra.mxu0 0
  %271 = vmatpush.bf16.msra.mxu0 0
  %272 = vmatpush.bf16.msra.mxu0 0
  %273 = vmatpush.bf16.msra.mxu0 %v264
  %274 = vmatmul.bf16.gmra.mxu0 %v261
  %v275 = vpop.f32.mrf.mxu0
  %v276 = vadd.f32 0.0, %v275
  %v277 = vpop.f32.mrf.mxu0
  %v278 = vadd.f32 0.0, %v277
  %279 = vdwg.mxu0
  %280 = vrot.lane.b32.xlu0 %v208, 120
  %v281 = vpop.permute.xlu0 %280
  %282 = vrot.lane.b32.xlu0 %v208, 88
  %v283 = vpop.permute.xlu0 %282
  %v285 = vsel %vm212, %v281, 0
  %v288 = vsel %vm212, %v283, 0
  %290 = vmatpush.bf16.xpose.msra.mxu0 0
  %291 = vmatpush.bf16.xpose.msra.mxu0 0
  %292 = vmatpush.bf16.xpose.msra.mxu0 0
  %293 = vmatpush.bf16.xpose.msra.mxu0 0
  %294 = vmatpush.bf16.xpose.msra.mxu0 0
  %295 = vmatpush.bf16.xpose.msra.mxu0 0
  %296 = vmatpush.bf16.xpose.msra.mxu0 0
  %297 = vmatpush.bf16.xpose.msra.mxu0 %v288
  %298 = vmatmul.bf16.gmra.mxu0 %v285
  %v299 = vpop.f32.mrf.mxu0
  %v300 = vadd.f32 %v119, %v299
  %v301 = vpop.f32.mrf.mxu0
  %v302 = vadd.f32 %v120, %v301
  %303 = vdwg.mxu0
  %v304 = vsel %vm233, %v300, -inf
  %305 = vmax.xlane.f32.xlu0 %v304
  %v306 = vpop.xlane.xlu0 %305
  %v307 = vsel %vm237, %v302, -inf
  %308 = vmax.xlane.f32.xlu0 %v307
  %v309 = vpop.xlane.xlu0 %308
  %v310 = vsub.f32 %v300, %v306
  %v311 = vsub.f32 %v302, %v309
  %v312 = vmul.f32 %v310, 1.442695
  %v313 = vpow.pop %v312
  %v314 = vmul.f32 %v311, 1.442695
  %v315 = vpow.pop %v314
  %v316 = vsel %vm233, %v313, 0.0
  %317 = vadd.xlane.f32.xlu0 %v316
  %v318 = vpop.xlane.xlu0 %317
  %v319 = vsel %vm237, %v315, 0.0
  %320 = vadd.xlane.f32.xlu0 %v319
  %v321 = vpop.xlane.xlu0 %320
  %v322 = vrcp.pop %v318
  %v323 = vrcp.pop %v321
  %v324 = vmul.f32 %v313, %v322
  %v325 = vmul.f32 %v315, %v323
  %v326 = vpack.c.bf16 %v325, %v324
  %327 = vrot.lane.b32.xlu0 %v208, 56
  %v328 = vpop.permute.xlu0 %327
  %v330 = vsel %vm233, %v326, 0
  %v333 = vsel %vm115, %v328, 0
  %335 = vmatpush.bf16.msra.mxu0 0
  %336 = vmatpush.bf16.msra.mxu0 0
  %337 = vmatpush.bf16.msra.mxu0 0
  %338 = vmatpush.bf16.msra.mxu0 0
  %339 = vmatpush.bf16.msra.mxu0 0
  %340 = vmatpush.bf16.msra.mxu0 0
  %341 = vmatpush.bf16.msra.mxu0 0
  %342 = vmatpush.bf16.msra.mxu0 %v333
  %343 = vmatmul.bf16.gmra.mxu0 %v330
  %v344 = vpop.f32.mrf.mxu0
  %v345 = vadd.f32 0.0, %v344
  %v346 = vpop.f32.mrf.mxu0
  %v347 = vadd.f32 0.0, %v346
  %348 = vdwg.mxu0
  %349 = vrot.lane.b32.xlu0 %v208, 112
  %v350 = vpop.permute.xlu0 %349
  %351 = vrot.lane.b32.xlu0 %v208, 80
  %v352 = vpop.permute.xlu0 %351
  %v354 = vsel %vm212, %v350, 0
  %v357 = vsel %vm212, %v352, 0
  %359 = vmatpush.bf16.xpose.msra.mxu0 0
  %360 = vmatpush.bf16.xpose.msra.mxu0 0
  %361 = vmatpush.bf16.xpose.msra.mxu0 0
  %362 = vmatpush.bf16.xpose.msra.mxu0 0
  %363 = vmatpush.bf16.xpose.msra.mxu0 0
  %364 = vmatpush.bf16.xpose.msra.mxu0 0
  %365 = vmatpush.bf16.xpose.msra.mxu0 0
  %366 = vmatpush.bf16.xpose.msra.mxu0 %v357
  %367 = vmatmul.bf16.gmra.mxu0 %v354
  %v368 = vpop.f32.mrf.mxu0
  %v369 = vadd.f32 %v119, %v368
  %v370 = vpop.f32.mrf.mxu0
  %v371 = vadd.f32 %v120, %v370
  %372 = vdwg.mxu0
  %v373 = vsel %vm233, %v369, -inf
  %374 = vmax.xlane.f32.xlu0 %v373
  %v375 = vpop.xlane.xlu0 %374
  %v376 = vsel %vm237, %v371, -inf
  %377 = vmax.xlane.f32.xlu0 %v376
  %v378 = vpop.xlane.xlu0 %377
  %v379 = vsub.f32 %v369, %v375
  %v380 = vsub.f32 %v371, %v378
  %v381 = vmul.f32 %v379, 1.442695
  %v382 = vpow.pop %v381
  %v383 = vmul.f32 %v380, 1.442695
  %v384 = vpow.pop %v383
  %v385 = vsel %vm233, %v382, 0.0
  %386 = vadd.xlane.f32.xlu0 %v385
  %v387 = vpop.xlane.xlu0 %386
  %v388 = vsel %vm237, %v384, 0.0
  %389 = vadd.xlane.f32.xlu0 %v388
  %v390 = vpop.xlane.xlu0 %389
  %v391 = vrcp.pop %v387
  %v392 = vrcp.pop %v390
  %v393 = vmul.f32 %v382, %v391
  %v394 = vmul.f32 %v384, %v392
  %v395 = vpack.c.bf16 %v394, %v393
  %396 = vrot.lane.b32.xlu0 %v208, 48
  %v397 = vpop.permute.xlu0 %396
  %v399 = vsel %vm233, %v395, 0
  %v402 = vsel %vm115, %v397, 0
  %404 = vmatpush.bf16.msra.mxu0 0
  %405 = vmatpush.bf16.msra.mxu0 0
  %406 = vmatpush.bf16.msra.mxu0 0
  %407 = vmatpush.bf16.msra.mxu0 0
  %408 = vmatpush.bf16.msra.mxu0 0
  %409 = vmatpush.bf16.msra.mxu0 0
  %410 = vmatpush.bf16.msra.mxu0 0
  %411 = vmatpush.bf16.msra.mxu0 %v402
  %412 = vmatmul.bf16.gmra.mxu0 %v399
  %v413 = vpop.f32.mrf.mxu0
  %v414 = vadd.f32 0.0, %v413
  %v415 = vpop.f32.mrf.mxu0
  %v416 = vadd.f32 0.0, %v415
  %417 = vdwg.mxu0
  %418 = vrot.lane.b32.xlu0 %v208, 104
  %v419 = vpop.permute.xlu0 %418
  %420 = vrot.lane.b32.xlu0 %v208, 72
  %v421 = vpop.permute.xlu0 %420
  %v423 = vsel %vm212, %v419, 0
  %v426 = vsel %vm212, %v421, 0
  %428 = vmatpush.bf16.xpose.msra.mxu0 0
  %429 = vmatpush.bf16.xpose.msra.mxu0 0
  %430 = vmatpush.bf16.xpose.msra.mxu0 0
  %431 = vmatpush.bf16.xpose.msra.mxu0 0
  %432 = vmatpush.bf16.xpose.msra.mxu0 0
  %433 = vmatpush.bf16.xpose.msra.mxu0 0
  %434 = vmatpush.bf16.xpose.msra.mxu0 0
  %435 = vmatpush.bf16.xpose.msra.mxu0 %v426
  %436 = vmatmul.bf16.gmra.mxu0 %v423
  %v437 = vpop.f32.mrf.mxu0
  %v438 = vadd.f32 %v119, %v437
  %v439 = vpop.f32.mrf.mxu0
  %v440 = vadd.f32 %v120, %v439
  %441 = vdwg.mxu0
  %v442 = vsel %vm233, %v438, -inf
  %443 = vmax.xlane.f32.xlu0 %v442
  %v444 = vpop.xlane.xlu0 %443
  %v445 = vsel %vm237, %v440, -inf
  %446 = vmax.xlane.f32.xlu0 %v445
  %v447 = vpop.xlane.xlu0 %446
  %v448 = vsub.f32 %v438, %v444
  %v449 = vsub.f32 %v440, %v447
  %v450 = vmul.f32 %v448, 1.442695
  %v451 = vpow.pop %v450
  %v452 = vmul.f32 %v449, 1.442695
  %v453 = vpow.pop %v452
  %v454 = vsel %vm233, %v451, 0.0
  %455 = vadd.xlane.f32.xlu0 %v454
  %v456 = vpop.xlane.xlu0 %455
  %v457 = vsel %vm237, %v453, 0.0
  %458 = vadd.xlane.f32.xlu0 %v457
  %v459 = vpop.xlane.xlu0 %458
  %v460 = vrcp.pop %v456
  %v461 = vrcp.pop %v459
  %v462 = vmul.f32 %v451, %v460
  %v463 = vmul.f32 %v453, %v461
  %v464 = vpack.c.bf16 %v463, %v462
  %465 = vrot.lane.b32.xlu0 %v208, 40
  %v466 = vpop.permute.xlu0 %465
  %v468 = vsel %vm233, %v464, 0
  %v471 = vsel %vm115, %v466, 0
  %473 = vmatpush.bf16.msra.mxu0 0
  %474 = vmatpush.bf16.msra.mxu0 0
  %475 = vmatpush.bf16.msra.mxu0 0
  %476 = vmatpush.bf16.msra.mxu0 0
  %477 = vmatpush.bf16.msra.mxu0 0
  %478 = vmatpush.bf16.msra.mxu0 0
  %479 = vmatpush.bf16.msra.mxu0 0
  %480 = vmatpush.bf16.msra.mxu0 %v471
  %481 = vmatmul.bf16.gmra.mxu0 %v468
  %v482 = vpop.f32.mrf.mxu0
  %v483 = vadd.f32 0.0, %v482
  %v484 = vpop.f32.mrf.mxu0
  %v485 = vadd.f32 0.0, %v484
  %486 = vdwg.mxu0
  %489 = vrot.lane.b32.xlu0 %v345, 8
  %v490 = vpop.permute.xlu0 %489
  %491 = vrot.lane.b32.xlu0 %v347, 8
  %v492 = vpop.permute.xlu0 %491
  %497 = vrot.lane.b32.xlu0 %v414, 16
  %v498 = vpop.permute.xlu0 %497
  %499 = vrot.lane.b32.xlu0 %v416, 16
  %v500 = vpop.permute.xlu0 %499
  %505 = vrot.lane.b32.xlu0 %v483, 24
  %v506 = vpop.permute.xlu0 %505
  %507 = vrot.lane.b32.xlu0 %v485, 24
  %v508 = vpop.permute.xlu0 %507
  %v511 = vsel %vm212, %v276, %v490
  %v512 = vsel %vm212, %v278, %v492
  %vm513 = vcmask 130048
  %v514 = vsel %vm513, %v511, %v498
  %v515 = vsel %vm513, %v512, %v500
  %vm516 = vcmask 195584
  %v517 = vsel %vm516, %v514, %v506
  %v518 = vsel %vm516, %v515, %v508
  %v519 = vld [vmem:[%s1 + $0x20] sm:$0xff]
  %v520 = vld [vmem:[%s1 + $0x28] sm:$0xff]
  %v521 = vld [vmem:[%s1 + $0x30] sm:$0xff]
  %v522 = vld [vmem:[%s1 + $0x38] sm:$0xff]
  %v523 = vld [vmem:[%s1 + $0xa5] sm:$0x1]
  %v524 = vpack.c.bf16 %v518, %v517
  %v525 = vpack.c.bf16 %v520, %v519
  %v526 = vpack.c.bf16 %v522, %v521
  %v528 = vsel %vm123, %v524, 0
  %530 = vmatpush.bf16.msra.mxu0 0
  %531 = vmatpush.bf16.msra.mxu0 0
  %532 = vmatpush.bf16.msra.mxu0 0
  %533 = vmatpush.bf16.msra.mxu0 0
  %534 = vmatpush.bf16.msra.mxu0 0
  %535 = vmatpush.bf16.msra.mxu0 0
  %536 = vmatpush.bf16.msra.mxu0 %v526
  %537 = vmatpush.bf16.msra.mxu0 %v525
  %538 = vmatmul.bf16.gmra.mxu0 %v528
  %v539 = vpop.f32.mrf.mxu0
  %v540 = vadd.f32 0.0, %v539
  %v541 = vpop.f32.mrf.mxu0
  %v542 = vadd.f32 0.0, %v541
  %543 = vdwg.mxu0
  %v544 = vadd.f32 %v118, %v540
  %v545 = vadd.f32 %v109, %v542
  %v546 = vperm.slane %v523, 0
  %v547 = vadd.f32 %v544, %v546
  %v548 = vadd.f32 %v545, %v546
  %v549 = vld [vmem:[%s1 + $0xa2] sm:$0x1]
  %v550 = vld [vmem:[%s1 + $0xa3] sm:$0x1]
  %v551 = vsel %vm123, %v547, 0.0
  %552 = vadd.xlane.f32.xlu0 %v551
  %v553 = vpop.xlane.xlu0 %552
  %v554 = vsel %vm127, %v548, 0.0
  %555 = vadd.xlane.f32.xlu0 %v554
  %v556 = vpop.xlane.xlu0 %555
  %v557 = vmul.f32 %v553, %v137
  %v558 = vmul.f32 %v556, %v137
  %v559 = vsub.f32 %v547, %v557
  %v560 = vsub.f32 %v548, %v558
  %v561 = vmul.f32 %v559, %v559
  %v562 = vmul.f32 %v560, %v560
  %v563 = vsel %vm123, %v561, 0.0
  %564 = vadd.xlane.f32.xlu0 %v563
  %v565 = vpop.xlane.xlu0 %564
  %v566 = vsel %vm127, %v562, 0.0
  %567 = vadd.xlane.f32.xlu0 %v566
  %v568 = vpop.xlane.xlu0 %567
  %v569 = vmul.f32 %v565, %v137
  %v570 = vmul.f32 %v568, %v137
  %v571 = vadd.f32 %v569, 1e-06
  %v572 = vadd.f32 %v570, 1e-06
  %v573 = vrsqrt.pop %v571
  %v574 = vmul.f32 %v573, %v571
  %v575 = vmul.f32 %v574, %v573
  %v576 = vmul.f32 0.5, %v575
  %v577 = vsub.f32 1.5, %v576
  %v578 = vmul.f32 %v573, %v577
  %vm579 = vweird.f32 %v571
  %vm580 = vweird.f32 %v573
  %vm581 = vmor %vm579, %vm580
  %v582 = vsel %vm581, %v573, %v578
  %v583 = vrsqrt.pop %v572
  %v584 = vmul.f32 %v583, %v572
  %v585 = vmul.f32 %v584, %v583
  %v586 = vmul.f32 0.5, %v585
  %v587 = vsub.f32 1.5, %v586
  %v588 = vmul.f32 %v583, %v587
  %vm589 = vweird.f32 %v572
  %vm590 = vweird.f32 %v583
  %vm591 = vmor %vm589, %vm590
  %v592 = vsel %vm591, %v583, %v588
  %v593 = vmul.f32 %v559, %v582
  %v594 = vmul.f32 %v560, %v592
  %v595 = vperm.slane %v549, 0
  %v596 = vmul.f32 %v593, %v595
  %v597 = vmul.f32 %v594, %v595
  %v598 = vperm.slane %v550, 0
  %v599 = vadd.f32 %v596, %v598
  %v600 = vadd.f32 %v597, %v598
  %v601 = vld [vmem:[%s1 + $0x40] sm:$0xff]
  %v602 = vld [vmem:[%s1 + $0x48] sm:$0xff]
  %v603 = vld [vmem:[%s1 + $0x50] sm:$0xff]
  %v604 = vld [vmem:[%s1 + $0x58] sm:$0xff]
  %v605 = vld [vmem:[%s1 + $0xa6] sm:$0x1]
  %v606 = vpack.c.bf16 %v600, %v599
  %v607 = vpack.c.bf16 %v602, %v601
  %v608 = vpack.c.bf16 %v604, %v603
  %v609 = vperm.slane %v605, 0
  %v611 = vsel %vm123, %v606, 0
  %613 = vmatpush.bf16.msra.mxu0 0
  %614 = vmatpush.bf16.msra.mxu0 0
  %615 = vmatpush.bf16.msra.mxu0 0
  %616 = vmatpush.bf16.msra.mxu0 0
  %617 = vmatpush.bf16.msra.mxu0 0
  %618 = vmatpush.bf16.msra.mxu0 0
  %619 = vmatpush.bf16.msra.mxu0 %v608
  %620 = vmatpush.bf16.msra.mxu0 %v607
  %621 = vmatmul.bf16.gmra.mxu0 %v611
  %v622 = vpop.f32.mrf.mxu0
  %v623 = vadd.f32 %v609, %v622
  %v624 = vpop.f32.mrf.mxu0
  %v625 = vadd.f32 %v609, %v624
  %626 = vdwg.mxu0
  %v627 = vmul.f32 %v623, 0.5
  %v628 = vmul.f32 %v625, 0.5
  %v629 = vmul.f32 %v623, 0.70710677
  %v630 = vmul.f32 %v625, 0.70710677
  %v631 = vmul.f32 %v629, %v629
  %v632 = vmin.f32 16.0, %v631
  %v633 = vmul.f32 %v632, 2.1237322e-06
  %v634 = vadd.f32 %v633, 0.00028619796
  %v635 = vmul.f32 %v632, %v634
  %v636 = vadd.f32 %v635, 0.0036580483
  %v637 = vmul.f32 %v632, %v636
  %v638 = vadd.f32 %v637, 0.05243302
  %v639 = vmul.f32 %v632, %v638
  %v640 = vadd.f32 %v639, 0.18741608
  %v641 = vmul.f32 %v632, %v640
  %v642 = vadd.f32 %v641, 1.1283791
  %v643 = vmul.f32 %v629, %v642
  %v644 = vmul.f32 %v632, 3.8918573e-05
  %v645 = vadd.f32 %v644, 0.001143296
  %v646 = vmul.f32 %v632, %v645
  %v647 = vadd.f32 %v646, 0.014752088
  %v648 = vmul.f32 %v632, %v647
  %v649 = vadd.f32 %v648, 0.112945676
  %v650 = vmul.f32 %v632, %v649
  %v651 = vadd.f32 %v650, 0.4994258
  %v652 = vmul.f32 %v632, %v651
  %v653 = vadd.f32 %v652, 1.0
  %v654 = vrcp.pop %v653
  %v655 = vmul.f32 %v653, %v654
  %v656 = vsub.f32 1.0, %v655
  %v657 = vmul.f32 %v654, %v656
  %v658 = vadd.f32 %v654, %v657
  %vm659 = vweird.f32 %v653
  %vm660 = vweird.f32 %v654
  %vm661 = vmor %vm659, %vm660
  %v662 = vsel %vm661, %v654, %v658
  %v663 = vand.u32 2147483647, %v653
  %vm664 = vcmp.eq.f32.partialorder %v663, 8.507059e+37
  %v665 = vand.u32 %v653, 2147483648
  %v666 = vor.u32 1.1754944e-38, %v665
  %v667 = vsel %vm664, %v666, %v662
  %v668 = vmul.f32 %v643, %v667
  %v669 = vmin.f32 %v668, 1.0
  %v670 = vmax.f32 %v669, -1.0
  %v671 = vmul.f32 %v630, %v630
  %v672 = vmin.f32 16.0, %v671
  %v673 = vmul.f32 %v672, 2.1237322e-06
  %v674 = vadd.f32 %v673, 0.00028619796
  %v675 = vmul.f32 %v672, %v674
  %v676 = vadd.f32 %v675, 0.0036580483
  %v677 = vmul.f32 %v672, %v676
  %v678 = vadd.f32 %v677, 0.05243302
  %v679 = vmul.f32 %v672, %v678
  %v680 = vadd.f32 %v679, 0.18741608
  %v681 = vmul.f32 %v672, %v680
  %v682 = vadd.f32 %v681, 1.1283791
  %v683 = vmul.f32 %v630, %v682
  %v684 = vmul.f32 %v672, 3.8918573e-05
  %v685 = vadd.f32 %v684, 0.001143296
  %v686 = vmul.f32 %v672, %v685
  %v687 = vadd.f32 %v686, 0.014752088
  %v688 = vmul.f32 %v672, %v687
  %v689 = vadd.f32 %v688, 0.112945676
  %v690 = vmul.f32 %v672, %v689
  %v691 = vadd.f32 %v690, 0.4994258
  %v692 = vmul.f32 %v672, %v691
  %v693 = vadd.f32 %v692, 1.0
  %v694 = vrcp.pop %v693
  %v695 = vmul.f32 %v693, %v694
  %v696 = vsub.f32 1.0, %v695
  %v697 = vmul.f32 %v694, %v696
  %v698 = vadd.f32 %v694, %v697
  %vm699 = vweird.f32 %v693
  %vm700 = vweird.f32 %v694
  %vm701 = vmor %vm699, %vm700
  %v702 = vsel %vm701, %v694, %v698
  %v703 = vand.u32 2147483647, %v693
  %vm704 = vcmp.eq.f32.partialorder %v703, 8.507059e+37
  %v705 = vand.u32 %v693, 2147483648
  %v706 = vor.u32 1.1754944e-38, %v705
  %v707 = vsel %vm704, %v706, %v702
  %v708 = vmul.f32 %v683, %v707
  %v709 = vmin.f32 %v708, 1.0
  %v710 = vmax.f32 %v709, -1.0
  %v711 = vadd.f32 %v670, 1.0
  %v712 = vadd.f32 %v710, 1.0
  %v713 = vmul.f32 %v627, %v711
  %v714 = vmul.f32 %v628, %v712
  %v715 = vld [vmem:[%s1 + $0x60] sm:$0xff]
  %v716 = vld [vmem:[%s1 + $0x68] sm:$0xff]
  %v717 = vld [vmem:[%s1 + $0x70] sm:$0xff]
  %v718 = vld [vmem:[%s1 + $0x78] sm:$0xff]
  %v719 = vld [vmem:[%s1 + $0x80] sm:$0xff]
  %v720 = vld [vmem:[%s1 + $0x88] sm:$0xff]
  %v721 = vld [vmem:[%s1 + $0x90] sm:$0xff]
  %v722 = vld [vmem:[%s1 + $0x98] sm:$0xff]
  %v723 = vld [vmem:[%s1 + $0xa7] sm:$0x1]
  %v724 = vpack.c.bf16 %v714, %v713
  %v725 = vpack.c.bf16 %v716, %v715
  %v726 = vpack.c.bf16 %v718, %v717
  %v727 = vpack.c.bf16 %v720, %v719
  %v728 = vpack.c.bf16 %v722, %v721
  %v730 = vsel %vm57, %v724, 0
  %732 = vmatpush.bf16.msra.mxu0 0
  %733 = vmatpush.bf16.msra.mxu0 0
  %734 = vmatpush.bf16.msra.mxu0 0
  %735 = vmatpush.bf16.msra.mxu0 0
  %736 = vmatpush.bf16.msra.mxu0 %v728
  %737 = vmatpush.bf16.msra.mxu0 %v727
  %738 = vmatpush.bf16.msra.mxu0 %v726
  %739 = vmatpush.bf16.msra.mxu0 %v725
  %740 = vmatmul.bf16.gmra.mxu0 %v730
  %v741 = vpop.f32.mrf.mxu0
  %v742 = vadd.f32 0.0, %v741
  %v743 = vpop.f32.mrf.mxu0
  %v744 = vadd.f32 0.0, %v743
  %745 = vdwg.mxu0
  %v746 = vadd.f32 %v547, %v742
  %v747 = vadd.f32 %v548, %v744
  %v748 = vperm.slane %v723, 0
  %v749 = vadd.f32 %v746, %v748
  %v750 = vadd.f32 %v747, %v748
  %v751 = vld [vmem:[%s1 + $0x148] sm:$0x1]
  %v752 = vld [vmem:[%s1 + $0x149] sm:$0x1]
  %v753 = vsel %vm123, %v749, 0.0
  %754 = vadd.xlane.f32.xlu0 %v753
  %v755 = vpop.xlane.xlu0 %754
  %v756 = vsel %vm127, %v750, 0.0
  %757 = vadd.xlane.f32.xlu0 %v756
  %v758 = vpop.xlane.xlu0 %757
  %v759 = vmul.f32 %v755, %v137
  %v760 = vmul.f32 %v758, %v137
  %v761 = vsub.f32 %v749, %v759
  %v762 = vsub.f32 %v750, %v760
  %v763 = vmul.f32 %v761, %v761
  %v764 = vmul.f32 %v762, %v762
  %v765 = vsel %vm123, %v763, 0.0
  %766 = vadd.xlane.f32.xlu0 %v765
  %v767 = vpop.xlane.xlu0 %766
  %v768 = vsel %vm127, %v764, 0.0
  %769 = vadd.xlane.f32.xlu0 %v768
  %v770 = vpop.xlane.xlu0 %769
  %v771 = vmul.f32 %v767, %v137
  %v772 = vmul.f32 %v770, %v137
  %v773 = vadd.f32 %v771, 1e-06
  %v774 = vadd.f32 %v772, 1e-06
  %v775 = vrsqrt.pop %v773
  %v776 = vmul.f32 %v775, %v773
  %v777 = vmul.f32 %v776, %v775
  %v778 = vmul.f32 0.5, %v777
  %v779 = vsub.f32 1.5, %v778
  %v780 = vmul.f32 %v775, %v779
  %vm781 = vweird.f32 %v773
  %vm782 = vweird.f32 %v775
  %vm783 = vmor %vm781, %vm782
  %v784 = vsel %vm783, %v775, %v780
  %v785 = vrsqrt.pop %v774
  %v786 = vmul.f32 %v785, %v774
  %v787 = vmul.f32 %v786, %v785
  %v788 = vmul.f32 0.5, %v787
  %v789 = vsub.f32 1.5, %v788
  %v790 = vmul.f32 %v785, %v789
  %vm791 = vweird.f32 %v774
  %vm792 = vweird.f32 %v785
  %vm793 = vmor %vm791, %vm792
  %v794 = vsel %vm793, %v785, %v790
  %v795 = vmul.f32 %v761, %v784
  %v796 = vmul.f32 %v762, %v794
  %v797 = vperm.slane %v751, 0
  %v798 = vmul.f32 %v795, %v797
  %v799 = vmul.f32 %v796, %v797
  %v800 = vperm.slane %v752, 0
  %v801 = vadd.f32 %v798, %v800
  %v802 = vadd.f32 %v799, %v800
  %v803 = vld [vmem:[%s1 + $0xa8] sm:$0xff]
  %v804 = vld [vmem:[%s1 + $0xb0] sm:$0xff]
  %v805 = vld [vmem:[%s1 + $0xb8] sm:$0xff]
  %v806 = vld [vmem:[%s1 + $0xc0] sm:$0xff]
  %v807 = vld [vmem:[%s1 + $0x14c] sm:$0x1]
  %v808 = vpack.c.bf16 %v802, %v801
  %v809 = vpack.c.bf16 %v804, %v803
  %v810 = vpack.c.bf16 %v806, %v805
  %v811 = vperm.slane %v807, 0
  %v813 = vsel %vm123, %v808, 0
  %815 = vmatpush.bf16.msra.mxu0 0
  %816 = vmatpush.bf16.msra.mxu0 0
  %817 = vmatpush.bf16.msra.mxu0 0
  %818 = vmatpush.bf16.msra.mxu0 0
  %819 = vmatpush.bf16.msra.mxu0 0
  %820 = vmatpush.bf16.msra.mxu0 0
  %821 = vmatpush.bf16.msra.mxu0 %v810
  %822 = vmatpush.bf16.msra.mxu0 %v809
  %823 = vmatmul.bf16.gmra.mxu0 %v813
  %v824 = vpop.f32.mrf.mxu0
  %v825 = vadd.f32 %v811, %v824
  %v826 = vpop.f32.mrf.mxu0
  %v827 = vadd.f32 %v811, %v826
  %828 = vdwg.mxu0
  %v829 = vpack.c.bf16 %v827, %v825
  %831 = vrot.lane.b32.xlu0 %v829, 96
  %v832 = vpop.permute.xlu0 %831
  %v834 = vsel %vm212, %v829, 0
  %v837 = vsel %vm212, %v832, 0
  %839 = vmatpush.bf16.xpose.msra.mxu0 0
  %840 = vmatpush.bf16.xpose.msra.mxu0 0
  %841 = vmatpush.bf16.xpose.msra.mxu0 0
  %842 = vmatpush.bf16.xpose.msra.mxu0 0
  %843 = vmatpush.bf16.xpose.msra.mxu0 0
  %844 = vmatpush.bf16.xpose.msra.mxu0 0
  %845 = vmatpush.bf16.xpose.msra.mxu0 0
  %846 = vmatpush.bf16.xpose.msra.mxu0 %v837
  %847 = vmatmul.bf16.gmra.mxu0 %v834
  %v848 = vpop.f32.mrf.mxu0
  %v849 = vadd.f32 %v119, %v848
  %v850 = vpop.f32.mrf.mxu0
  %v851 = vadd.f32 %v120, %v850
  %852 = vdwg.mxu0
  %v853 = vsel %vm233, %v849, -inf
  %854 = vmax.xlane.f32.xlu0 %v853
  %v855 = vpop.xlane.xlu0 %854
  %v856 = vsel %vm237, %v851, -inf
  %857 = vmax.xlane.f32.xlu0 %v856
  %v858 = vpop.xlane.xlu0 %857
  %v859 = vsub.f32 %v849, %v855
  %v860 = vsub.f32 %v851, %v858
  %v861 = vmul.f32 %v859, 1.442695
  %v862 = vpow.pop %v861
  %v863 = vmul.f32 %v860, 1.442695
  %v864 = vpow.pop %v863
  %v865 = vsel %vm233, %v862, 0.0
  %866 = vadd.xlane.f32.xlu0 %v865
  %v867 = vpop.xlane.xlu0 %866
  %v868 = vsel %vm237, %v864, 0.0
  %869 = vadd.xlane.f32.xlu0 %v868
  %v870 = vpop.xlane.xlu0 %869
  %v871 = vrcp.pop %v867
  %v872 = vrcp.pop %v870
  %v873 = vmul.f32 %v862, %v871
  %v874 = vmul.f32 %v864, %v872
  %v875 = vpack.c.bf16 %v874, %v873
  %876 = vrot.lane.b32.xlu0 %v829, 64
  %v877 = vpop.permute.xlu0 %876
  %v879 = vsel %vm233, %v875, 0
  %v882 = vsel %vm115, %v877, 0
  %884 = vmatpush.bf16.msra.mxu0 0
  %885 = vmatpush.bf16.msra.mxu0 0
  %886 = vmatpush.bf16.msra.mxu0 0
  %887 = vmatpush.bf16.msra.mxu0 0
  %888 = vmatpush.bf16.msra.mxu0 0
  %889 = vmatpush.bf16.msra.mxu0 0
  %890 = vmatpush.bf16.msra.mxu0 0
  %891 = vmatpush.bf16.msra.mxu0 %v882
  %892 = vmatmul.bf16.gmra.mxu0 %v879
  %v893 = vpop.f32.mrf.mxu0
  %v894 = vadd.f32 0.0, %v893
  %v895 = vpop.f32.mrf.mxu0
  %v896 = vadd.f32 0.0, %v895
  %897 = vdwg.mxu0
  %898 = vrot.lane.b32.xlu0 %v829, 120
  %v899 = vpop.permute.xlu0 %898
  %900 = vrot.lane.b32.xlu0 %v829, 88
  %v901 = vpop.permute.xlu0 %900
  %v903 = vsel %vm212, %v899, 0
  %v906 = vsel %vm212, %v901, 0
  %908 = vmatpush.bf16.xpose.msra.mxu0 0
  %909 = vmatpush.bf16.xpose.msra.mxu0 0
  %910 = vmatpush.bf16.xpose.msra.mxu0 0
  %911 = vmatpush.bf16.xpose.msra.mxu0 0
  %912 = vmatpush.bf16.xpose.msra.mxu0 0
  %913 = vmatpush.bf16.xpose.msra.mxu0 0
  %914 = vmatpush.bf16.xpose.msra.mxu0 0
  %915 = vmatpush.bf16.xpose.msra.mxu0 %v906
  %916 = vmatmul.bf16.gmra.mxu0 %v903
  %v917 = vpop.f32.mrf.mxu0
  %v918 = vadd.f32 %v119, %v917
  %v919 = vpop.f32.mrf.mxu0
  %v920 = vadd.f32 %v120, %v919
  %921 = vdwg.mxu0
  %v922 = vsel %vm233, %v918, -inf
  %923 = vmax.xlane.f32.xlu0 %v922
  %v924 = vpop.xlane.xlu0 %923
  %v925 = vsel %vm237, %v920, -inf
  %926 = vmax.xlane.f32.xlu0 %v925
  %v927 = vpop.xlane.xlu0 %926
  %v928 = vsub.f32 %v918, %v924
  %v929 = vsub.f32 %v920, %v927
  %v930 = vmul.f32 %v928, 1.442695
  %v931 = vpow.pop %v930
  %v932 = vmul.f32 %v929, 1.442695
  %v933 = vpow.pop %v932
  %v934 = vsel %vm233, %v931, 0.0
  %935 = vadd.xlane.f32.xlu0 %v934
  %v936 = vpop.xlane.xlu0 %935
  %v937 = vsel %vm237, %v933, 0.0
  %938 = vadd.xlane.f32.xlu0 %v937
  %v939 = vpop.xlane.xlu0 %938
  %v940 = vrcp.pop %v936
  %v941 = vrcp.pop %v939
  %v942 = vmul.f32 %v931, %v940
  %v943 = vmul.f32 %v933, %v941
  %v944 = vpack.c.bf16 %v943, %v942
  %945 = vrot.lane.b32.xlu0 %v829, 56
  %v946 = vpop.permute.xlu0 %945
  %v948 = vsel %vm233, %v944, 0
  %v951 = vsel %vm115, %v946, 0
  %953 = vmatpush.bf16.msra.mxu0 0
  %954 = vmatpush.bf16.msra.mxu0 0
  %955 = vmatpush.bf16.msra.mxu0 0
  %956 = vmatpush.bf16.msra.mxu0 0
  %957 = vmatpush.bf16.msra.mxu0 0
  %958 = vmatpush.bf16.msra.mxu0 0
  %959 = vmatpush.bf16.msra.mxu0 0
  %960 = vmatpush.bf16.msra.mxu0 %v951
  %961 = vmatmul.bf16.gmra.mxu0 %v948
  %v962 = vpop.f32.mrf.mxu0
  %v963 = vadd.f32 0.0, %v962
  %v964 = vpop.f32.mrf.mxu0
  %v965 = vadd.f32 0.0, %v964
  %966 = vdwg.mxu0
  %967 = vrot.lane.b32.xlu0 %v829, 112
  %v968 = vpop.permute.xlu0 %967
  %969 = vrot.lane.b32.xlu0 %v829, 80
  %v970 = vpop.permute.xlu0 %969
  %v972 = vsel %vm212, %v968, 0
  %v975 = vsel %vm212, %v970, 0
  %977 = vmatpush.bf16.xpose.msra.mxu0 0
  %978 = vmatpush.bf16.xpose.msra.mxu0 0
  %979 = vmatpush.bf16.xpose.msra.mxu0 0
  %980 = vmatpush.bf16.xpose.msra.mxu0 0
  %981 = vmatpush.bf16.xpose.msra.mxu0 0
  %982 = vmatpush.bf16.xpose.msra.mxu0 0
  %983 = vmatpush.bf16.xpose.msra.mxu0 0
  %984 = vmatpush.bf16.xpose.msra.mxu0 %v975
  %985 = vmatmul.bf16.gmra.mxu0 %v972
  %v986 = vpop.f32.mrf.mxu0
  %v987 = vadd.f32 %v119, %v986
  %v988 = vpop.f32.mrf.mxu0
  %v989 = vadd.f32 %v120, %v988
  %990 = vdwg.mxu0
  %v991 = vsel %vm233, %v987, -inf
  %992 = vmax.xlane.f32.xlu0 %v991
  %v993 = vpop.xlane.xlu0 %992
  %v994 = vsel %vm237, %v989, -inf
  %995 = vmax.xlane.f32.xlu0 %v994
  %v996 = vpop.xlane.xlu0 %995
  %v997 = vsub.f32 %v987, %v993
  %v998 = vsub.f32 %v989, %v996
  %v999 = vmul.f32 %v997, 1.442695
  %v1000 = vpow.pop %v999
  %v1001 = vmul.f32 %v998, 1.442695
  %v1002 = vpow.pop %v1001
  %v1003 = vsel %vm233, %v1000, 0.0
  %1004 = vadd.xlane.f32.xlu0 %v1003
  %v1005 = vpop.xlane.xlu0 %1004
  %v1006 = vsel %vm237, %v1002, 0.0
  %1007 = vadd.xlane.f32.xlu0 %v1006
  %v1008 = vpop.xlane.xlu0 %1007
  %v1009 = vrcp.pop %v1005
  %v1010 = vrcp.pop %v1008
  %v1011 = vmul.f32 %v1000, %v1009
  %v1012 = vmul.f32 %v1002, %v1010
  %v1013 = vpack.c.bf16 %v1012, %v1011
  %1014 = vrot.lane.b32.xlu0 %v829, 48
  %v1015 = vpop.permute.xlu0 %1014
  %v1017 = vsel %vm233, %v1013, 0
  %v1020 = vsel %vm115, %v1015, 0
  %1022 = vmatpush.bf16.msra.mxu0 0
  %1023 = vmatpush.bf16.msra.mxu0 0
  %1024 = vmatpush.bf16.msra.mxu0 0
  %1025 = vmatpush.bf16.msra.mxu0 0
  %1026 = vmatpush.bf16.msra.mxu0 0
  %1027 = vmatpush.bf16.msra.mxu0 0
  %1028 = vmatpush.bf16.msra.mxu0 0
  %1029 = vmatpush.bf16.msra.mxu0 %v1020
  %1030 = vmatmul.bf16.gmra.mxu0 %v1017
  %v1031 = vpop.f32.mrf.mxu0
  %v1032 = vadd.f32 0.0, %v1031
  %v1033 = vpop.f32.mrf.mxu0
  %v1034 = vadd.f32 0.0, %v1033
  %1035 = vdwg.mxu0
  %1036 = vrot.lane.b32.xlu0 %v829, 104
  %v1037 = vpop.permute.xlu0 %1036
  %1038 = vrot.lane.b32.xlu0 %v829, 72
  %v1039 = vpop.permute.xlu0 %1038
  %v1041 = vsel %vm212, %v1037, 0
  %v1044 = vsel %vm212, %v1039, 0
  %1046 = vmatpush.bf16.xpose.msra.mxu0 0
  %1047 = vmatpush.bf16.xpose.msra.mxu0 0
  %1048 = vmatpush.bf16.xpose.msra.mxu0 0
  %1049 = vmatpush.bf16.xpose.msra.mxu0 0
  %1050 = vmatpush.bf16.xpose.msra.mxu0 0
  %1051 = vmatpush.bf16.xpose.msra.mxu0 0
  %1052 = vmatpush.bf16.xpose.msra.mxu0 0
  %1053 = vmatpush.bf16.xpose.msra.mxu0 %v1044
  %1054 = vmatmul.bf16.gmra.mxu0 %v1041
  %v1055 = vpop.f32.mrf.mxu0
  %v1056 = vadd.f32 %v119, %v1055
  %v1057 = vpop.f32.mrf.mxu0
  %v1058 = vadd.f32 %v120, %v1057
  %1059 = vdwg.mxu0
  %v1060 = vsel %vm233, %v1056, -inf
  %1061 = vmax.xlane.f32.xlu0 %v1060
  %v1062 = vpop.xlane.xlu0 %1061
  %v1063 = vsel %vm237, %v1058, -inf
  %1064 = vmax.xlane.f32.xlu0 %v1063
  %v1065 = vpop.xlane.xlu0 %1064
  %v1066 = vsub.f32 %v1056, %v1062
  %v1067 = vsub.f32 %v1058, %v1065
  %v1068 = vmul.f32 %v1066, 1.442695
  %v1069 = vpow.pop %v1068
  %v1070 = vmul.f32 %v1067, 1.442695
  %v1071 = vpow.pop %v1070
  %v1072 = vsel %vm233, %v1069, 0.0
  %1073 = vadd.xlane.f32.xlu0 %v1072
  %v1074 = vpop.xlane.xlu0 %1073
  %v1075 = vsel %vm237, %v1071, 0.0
  %1076 = vadd.xlane.f32.xlu0 %v1075
  %v1077 = vpop.xlane.xlu0 %1076
  %v1078 = vrcp.pop %v1074
  %v1079 = vrcp.pop %v1077
  %v1080 = vmul.f32 %v1069, %v1078
  %v1081 = vmul.f32 %v1071, %v1079
  %v1082 = vpack.c.bf16 %v1081, %v1080
  %1083 = vrot.lane.b32.xlu0 %v829, 40
  %v1084 = vpop.permute.xlu0 %1083
  %v1086 = vsel %vm233, %v1082, 0
  %v1089 = vsel %vm115, %v1084, 0
  %1091 = vmatpush.bf16.msra.mxu0 0
  %1092 = vmatpush.bf16.msra.mxu0 0
  %1093 = vmatpush.bf16.msra.mxu0 0
  %1094 = vmatpush.bf16.msra.mxu0 0
  %1095 = vmatpush.bf16.msra.mxu0 0
  %1096 = vmatpush.bf16.msra.mxu0 0
  %1097 = vmatpush.bf16.msra.mxu0 0
  %1098 = vmatpush.bf16.msra.mxu0 %v1089
  %1099 = vmatmul.bf16.gmra.mxu0 %v1086
  %v1100 = vpop.f32.mrf.mxu0
  %v1101 = vadd.f32 0.0, %v1100
  %v1102 = vpop.f32.mrf.mxu0
  %v1103 = vadd.f32 0.0, %v1102
  %1104 = vdwg.mxu0
  %1107 = vrot.lane.b32.xlu0 %v963, 8
  %v1108 = vpop.permute.xlu0 %1107
  %1109 = vrot.lane.b32.xlu0 %v965, 8
  %v1110 = vpop.permute.xlu0 %1109
  %1115 = vrot.lane.b32.xlu0 %v1032, 16
  %v1116 = vpop.permute.xlu0 %1115
  %1117 = vrot.lane.b32.xlu0 %v1034, 16
  %v1118 = vpop.permute.xlu0 %1117
  %1123 = vrot.lane.b32.xlu0 %v1101, 24
  %v1124 = vpop.permute.xlu0 %1123
  %1125 = vrot.lane.b32.xlu0 %v1103, 24
  %v1126 = vpop.permute.xlu0 %1125
  %v1129 = vsel %vm212, %v894, %v1108
  %v1130 = vsel %vm212, %v896, %v1110
  %v1131 = vsel %vm513, %v1129, %v1116
  %v1132 = vsel %vm513, %v1130, %v1118
  %v1133 = vsel %vm516, %v1131, %v1124
  %v1134 = vsel %vm516, %v1132, %v1126
  %v1135 = vld [vmem:[%s1 + $0xc8] sm:$0xff]
  %v1136 = vld [vmem:[%s1 + $0xd0] sm:$0xff]
  %v1137 = vld [vmem:[%s1 + $0xd8] sm:$0xff]
  %v1138 = vld [vmem:[%s1 + $0xe0] sm:$0xff]
  %v1139 = vld [vmem:[%s1 + $0x14d] sm:$0x1]
  %v1140 = vpack.c.bf16 %v1134, %v1133
  %v1141 = vpack.c.bf16 %v1136, %v1135
  %v1142 = vpack.c.bf16 %v1138, %v1137
  %v1144 = vsel %vm123, %v1140, 0
  %1146 = vmatpush.bf16.msra.mxu0 0
  %1147 = vmatpush.bf16.msra.mxu0 0
  %1148 = vmatpush.bf16.msra.mxu0 0
  %1149 = vmatpush.bf16.msra.mxu0 0
  %1150 = vmatpush.bf16.msra.mxu0 0
  %1151 = vmatpush.bf16.msra.mxu0 0
  %1152 = vmatpush.bf16.msra.mxu0 %v1142
  %1153 = vmatpush.bf16.msra.mxu0 %v1141
  %1154 = vmatmul.bf16.gmra.mxu0 %v1144
  %v1155 = vpop.f32.mrf.mxu0
  %v1156 = vadd.f32 0.0, %v1155
  %v1157 = vpop.f32.mrf.mxu0
  %v1158 = vadd.f32 0.0, %v1157
  %1159 = vdwg.mxu0
  %v1160 = vadd.f32 %v749, %v1156
  %v1161 = vadd.f32 %v750, %v1158
  %v1162 = vperm.slane %v1139, 0
  %v1163 = vadd.f32 %v1160, %v1162
  %v1164 = vadd.f32 %v1161, %v1162
  %v1165 = vld [vmem:[%s1 + $0x14a] sm:$0x1]
  %v1166 = vld [vmem:[%s1 + $0x14b] sm:$0x1]
  %v1167 = vsel %vm123, %v1163, 0.0
  %1168 = vadd.xlane.f32.xlu0 %v1167
  %v1169 = vpop.xlane.xlu0 %1168
  %v1170 = vsel %vm127, %v1164, 0.0
  %1171 = vadd.xlane.f32.xlu0 %v1170
  %v1172 = vpop.xlane.xlu0 %1171
  %v1173 = vmul.f32 %v1169, %v137
  %v1174 = vmul.f32 %v1172, %v137
  %v1175 = vsub.f32 %v1163, %v1173
  %v1176 = vsub.f32 %v1164, %v1174
  %v1177 = vmul.f32 %v1175, %v1175
  %v1178 = vmul.f32 %v1176, %v1176
  %v1179 = vsel %vm123, %v1177, 0.0
  %1180 = vadd.xlane.f32.xlu0 %v1179
  %v1181 = vpop.xlane.xlu0 %1180
  %v1182 = vsel %vm127, %v1178, 0.0
  %1183 = vadd.xlane.f32.xlu0 %v1182
  %v1184 = vpop.xlane.xlu0 %1183
  %v1185 = vmul.f32 %v1181, %v137
  %v1186 = vmul.f32 %v1184, %v137
  %v1187 = vadd.f32 %v1185, 1e-06
  %v1188 = vadd.f32 %v1186, 1e-06
  %v1189 = vrsqrt.pop %v1187
  %v1190 = vmul.f32 %v1189, %v1187
  %v1191 = vmul.f32 %v1190, %v1189
  %v1192 = vmul.f32 0.5, %v1191
  %v1193 = vsub.f32 1.5, %v1192
  %v1194 = vmul.f32 %v1189, %v1193
  %vm1195 = vweird.f32 %v1187
  %vm1196 = vweird.f32 %v1189
  %vm1197 = vmor %vm1195, %vm1196
  %v1198 = vsel %vm1197, %v1189, %v1194
  %v1199 = vrsqrt.pop %v1188
  %v1200 = vmul.f32 %v1199, %v1188
  %v1201 = vmul.f32 %v1200, %v1199
  %v1202 = vmul.f32 0.5, %v1201
  %v1203 = vsub.f32 1.5, %v1202
  %v1204 = vmul.f32 %v1199, %v1203
  %vm1205 = vweird.f32 %v1188
  %vm1206 = vweird.f32 %v1199
  %vm1207 = vmor %vm1205, %vm1206
  %v1208 = vsel %vm1207, %v1199, %v1204
  %v1209 = vmul.f32 %v1175, %v1198
  %v1210 = vmul.f32 %v1176, %v1208
  %v1211 = vperm.slane %v1165, 0
  %v1212 = vmul.f32 %v1209, %v1211
  %v1213 = vmul.f32 %v1210, %v1211
  %v1214 = vperm.slane %v1166, 0
  %v1215 = vadd.f32 %v1212, %v1214
  %v1216 = vadd.f32 %v1213, %v1214
  %v1217 = vld [vmem:[%s1 + $0xe8] sm:$0xff]
  %v1218 = vld [vmem:[%s1 + $0xf0] sm:$0xff]
  %v1219 = vld [vmem:[%s1 + $0xf8] sm:$0xff]
  %v1220 = vld [vmem:[%s1 + $0x100] sm:$0xff]
  %v1221 = vld [vmem:[%s1 + $0x14e] sm:$0x1]
  %v1222 = vpack.c.bf16 %v1216, %v1215
  %v1223 = vpack.c.bf16 %v1218, %v1217
  %v1224 = vpack.c.bf16 %v1220, %v1219
  %v1225 = vperm.slane %v1221, 0
  %v1227 = vsel %vm123, %v1222, 0
  %1229 = vmatpush.bf16.msra.mxu0 0
  %1230 = vmatpush.bf16.msra.mxu0 0
  %1231 = vmatpush.bf16.msra.mxu0 0
  %1232 = vmatpush.bf16.msra.mxu0 0
  %1233 = vmatpush.bf16.msra.mxu0 0
  %1234 = vmatpush.bf16.msra.mxu0 0
  %1235 = vmatpush.bf16.msra.mxu0 %v1224
  %1236 = vmatpush.bf16.msra.mxu0 %v1223
  %1237 = vmatmul.bf16.gmra.mxu0 %v1227
  %v1238 = vpop.f32.mrf.mxu0
  %v1239 = vadd.f32 %v1225, %v1238
  %v1240 = vpop.f32.mrf.mxu0
  %v1241 = vadd.f32 %v1225, %v1240
  %1242 = vdwg.mxu0
  %v1243 = vmul.f32 %v1239, 0.5
  %v1244 = vmul.f32 %v1241, 0.5
  %v1245 = vmul.f32 %v1239, 0.70710677
  %v1246 = vmul.f32 %v1241, 0.70710677
  %v1247 = vmul.f32 %v1245, %v1245
  %v1248 = vmin.f32 16.0, %v1247
  %v1249 = vmul.f32 %v1248, 2.1237322e-06
  %v1250 = vadd.f32 %v1249, 0.00028619796
  %v1251 = vmul.f32 %v1248, %v1250
  %v1252 = vadd.f32 %v1251, 0.0036580483
  %v1253 = vmul.f32 %v1248, %v1252
  %v1254 = vadd.f32 %v1253, 0.05243302
  %v1255 = vmul.f32 %v1248, %v1254
  %v1256 = vadd.f32 %v1255, 0.18741608
  %v1257 = vmul.f32 %v1248, %v1256
  %v1258 = vadd.f32 %v1257, 1.1283791
  %v1259 = vmul.f32 %v1245, %v1258
  %v1260 = vmul.f32 %v1248, 3.8918573e-05
  %v1261 = vadd.f32 %v1260, 0.001143296
  %v1262 = vmul.f32 %v1248, %v1261
  %v1263 = vadd.f32 %v1262, 0.014752088
  %v1264 = vmul.f32 %v1248, %v1263
  %v1265 = vadd.f32 %v1264, 0.112945676
  %v1266 = vmul.f32 %v1248, %v1265
  %v1267 = vadd.f32 %v1266, 0.4994258
  %v1268 = vmul.f32 %v1248, %v1267
  %v1269 = vadd.f32 %v1268, 1.0
  %v1270 = vrcp.pop %v1269
  %v1271 = vmul.f32 %v1269, %v1270
  %v1272 = vsub.f32 1.0, %v1271
  %v1273 = vmul.f32 %v1270, %v1272
  %v1274 = vadd.f32 %v1270, %v1273
  %vm1275 = vweird.f32 %v1269
  %vm1276 = vweird.f32 %v1270
  %vm1277 = vmor %vm1275, %vm1276
  %v1278 = vsel %vm1277, %v1270, %v1274
  %v1279 = vand.u32 2147483647, %v1269
  %vm1280 = vcmp.eq.f32.partialorder %v1279, 8.507059e+37
  %v1281 = vand.u32 %v1269, 2147483648
  %v1282 = vor.u32 1.1754944e-38, %v1281
  %v1283 = vsel %vm1280, %v1282, %v1278
  %v1284 = vmul.f32 %v1259, %v1283
  %v1285 = vmin.f32 %v1284, 1.0
  %v1286 = vmax.f32 %v1285, -1.0
  %v1287 = vmul.f32 %v1246, %v1246
  %v1288 = vmin.f32 16.0, %v1287
  %v1289 = vmul.f32 %v1288, 2.1237322e-06
  %v1290 = vadd.f32 %v1289, 0.00028619796
  %v1291 = vmul.f32 %v1288, %v1290
  %v1292 = vadd.f32 %v1291, 0.0036580483
  %v1293 = vmul.f32 %v1288, %v1292
  %v1294 = vadd.f32 %v1293, 0.05243302
  %v1295 = vmul.f32 %v1288, %v1294
  %v1296 = vadd.f32 %v1295, 0.18741608
  %v1297 = vmul.f32 %v1288, %v1296
  %v1298 = vadd.f32 %v1297, 1.1283791
  %v1299 = vmul.f32 %v1246, %v1298
  %v1300 = vmul.f32 %v1288, 3.8918573e-05
  %v1301 = vadd.f32 %v1300, 0.001143296
  %v1302 = vmul.f32 %v1288, %v1301
  %v1303 = vadd.f32 %v1302, 0.014752088
  %v1304 = vmul.f32 %v1288, %v1303
  %v1305 = vadd.f32 %v1304, 0.112945676
  %v1306 = vmul.f32 %v1288, %v1305
  %v1307 = vadd.f32 %v1306, 0.4994258
  %v1308 = vmul.f32 %v1288, %v1307
  %v1309 = vadd.f32 %v1308, 1.0
  %v1310 = vrcp.pop %v1309
  %v1311 = vmul.f32 %v1309, %v1310
  %v1312 = vsub.f32 1.0, %v1311
  %v1313 = vmul.f32 %v1310, %v1312
  %v1314 = vadd.f32 %v1310, %v1313
  %vm1315 = vweird.f32 %v1309
  %vm1316 = vweird.f32 %v1310
  %vm1317 = vmor %vm1315, %vm1316
  %v1318 = vsel %vm1317, %v1310, %v1314
  %v1319 = vand.u32 2147483647, %v1309
  %vm1320 = vcmp.eq.f32.partialorder %v1319, 8.507059e+37
  %v1321 = vand.u32 %v1309, 2147483648
  %v1322 = vor.u32 1.1754944e-38, %v1321
  %v1323 = vsel %vm1320, %v1322, %v1318
  %v1324 = vmul.f32 %v1299, %v1323
  %v1325 = vmin.f32 %v1324, 1.0
  %v1326 = vmax.f32 %v1325, -1.0
  %v1327 = vadd.f32 %v1286, 1.0
  %v1328 = vadd.f32 %v1326, 1.0
  %v1329 = vmul.f32 %v1243, %v1327
  %v1330 = vmul.f32 %v1244, %v1328
  %v1331 = vld [vmem:[%s1 + $0x108] sm:$0xff]
  %v1332 = vld [vmem:[%s1 + $0x110] sm:$0xff]
  %v1333 = vld [vmem:[%s1 + $0x118] sm:$0xff]
  %v1334 = vld [vmem:[%s1 + $0x120] sm:$0xff]
  %v1335 = vld [vmem:[%s1 + $0x128] sm:$0xff]
  %v1336 = vld [vmem:[%s1 + $0x130] sm:$0xff]
  %v1337 = vld [vmem:[%s1 + $0x138] sm:$0xff]
  %v1338 = vld [vmem:[%s1 + $0x140] sm:$0xff]
  %v1339 = vld [vmem:[%s1 + $0x14f] sm:$0x1]
  %v1340 = vpack.c.bf16 %v1330, %v1329
  %v1341 = vpack.c.bf16 %v1332, %v1331
  %v1342 = vpack.c.bf16 %v1334, %v1333
  %v1343 = vpack.c.bf16 %v1336, %v1335
  %v1344 = vpack.c.bf16 %v1338, %v1337
  %v1346 = vsel %vm57, %v1340, 0
  %1348 = vmatpush.bf16.msra.mxu0 0
  %1349 = vmatpush.bf16.msra.mxu0 0
  %1350 = vmatpush.bf16.msra.mxu0 0
  %1351 = vmatpush.bf16.msra.mxu0 0
  %1352 = vmatpush.bf16.msra.mxu0 %v1344
  %1353 = vmatpush.bf16.msra.mxu0 %v1343
  %1354 = vmatpush.bf16.msra.mxu0 %v1342
  %1355 = vmatpush.bf16.msra.mxu0 %v1341
  %1356 = vmatmul.bf16.gmra.mxu0 %v1346
  %v1357 = vpop.f32.mrf.mxu0
  %v1358 = vadd.f32 0.0, %v1357
  %v1359 = vpop.f32.mrf.mxu0
  %1360 = vdwg.mxu0
  %v1361 = vadd.f32 %v1163, %v1358
  %v1362 = vperm.slane %v1339, 0
  %v1363 = vadd.f32 %v1361, %v1362
  %v1364 = vld [vmem:[%s2 + $0xc8] sm:$0x1]
  %v1365 = vld [vmem:[%s2 + $0xc9] sm:$0x1]
  %v1366 = vsel %vm123, %v1363, 0.0
  %1367 = vadd.xlane.f32.xlu0 %v1366
  %v1368 = vpop.xlane.xlu0 %1367
  %v1369 = vmul.f32 %v1368, %v137
  %v1370 = vsub.f32 %v1363, %v1369
  %v1371 = vmul.f32 %v1370, %v1370
  %v1372 = vsel %vm123, %v1371, 0.0
  %1373 = vadd.xlane.f32.xlu0 %v1372
  %v1374 = vpop.xlane.xlu0 %1373
  %v1375 = vmul.f32 %v1374, %v137
  %v1376 = vadd.f32 %v1375, 1e-06
  %v1377 = vrsqrt.pop %v1376
  %v1378 = vmul.f32 %v1377, %v1376
  %v1379 = vmul.f32 %v1378, %v1377
  %v1380 = vmul.f32 0.5, %v1379
  %v1381 = vsub.f32 1.5, %v1380
  %v1382 = vmul.f32 %v1377, %v1381
  %vm1383 = vweird.f32 %v1376
  %vm1384 = vweird.f32 %v1377
  %vm1385 = vmor %vm1383, %vm1384
  %v1386 = vsel %vm1385, %v1377, %v1382
  %v1387 = vmul.f32 %v1370, %v1386
  %v1388 = vperm.slane %v1364, 0
  %v1389 = vmul.f32 %v1387, %v1388
  %v1390 = vperm.slane %v1365, 0
  %v1391 = vadd.f32 %v1389, %v1390
  %v1393 = vrot.slane %v1391, 1
  %v1395 = vadd.f32 %v1391, %v1393
  %v1396 = vmul.f32 %v1395, 0.5
  %v1398 = vrot.slane %v1396, 5
  %v1400 = vsel %vm111, %v1396, %v1398
  %v1401 = vld [vmem:[%s2 + $0xca] sm:$0xff]
  %v1402 = vld [vmem:[%s2 + $0xd2] sm:$0xff]
  %v1403 = vld [vmem:[%s2 + $0xda] sm:$0xff]
  %v1404 = vld [vmem:[%s2 + $0xe2] sm:$0xff]
  %v1405 = vld [vmem:[%s2 + $0xea] sm:$0x1]
  %v1406 = vpack.c.bf16 %v1400, %v1400
  %v1407 = vpack.c.bf16 %v1402, %v1401
  %v1408 = vpack.c.bf16 %v1404, %v1403
  %v1409 = vperm.slane %v1405, 0
  %v1411 = vsel %vm123, %v1406, 0
  %1413 = vmatpush.bf16.msra.mxu0 0
  %1414 = vmatpush.bf16.msra.mxu0 0
  %1415 = vmatpush.bf16.msra.mxu0 0
  %1416 = vmatpush.bf16.msra.mxu0 0
  %1417 = vmatpush.bf16.msra.mxu0 0
  %1418 = vmatpush.bf16.msra.mxu0 0
  %1419 = vmatpush.bf16.msra.mxu0 %v1408
  %1420 = vmatpush.bf16.msra.mxu0 %v1407
  %1421 = vmatmul.bf16.gmra.mxu0 %v1411
  %v1422 = vpop.f32.mrf.mxu0
  %v1423 = vadd.f32 %v1409, %v1422
  %v1424 = vpop.f32.mrf.mxu0
  %1425 = vdwg.mxu0
  %v1426 = vsel %vm123, %v1400, 0.0
  %v1428 = vrot.slane %v1426, 6
  %v1430 = vsel %vm113, %v1423, %v1428
  %1431 = vst [vmem:[%s3] sm:$0xf] %v1430
  // Predicated region
  $region14: #{_forward_impl.1} parent=0 // pred_check
    _
  $region15: #{_forward_impl.1} parent=0 // pred_check_branch
    %1433 = sbr.rel (0) target = $region17
  $region16: #{_forward_impl.1} parent=0 // pred_region
    _
  $region17: #{_forward_impl.1} parent=0 // pred_fallthru
    _
  // Predicated region
  $region18: #{_forward_impl.1} parent=0 // pred_check
    _
  $region19: #{_forward_impl.1} parent=0 // pred_check_branch
    %1435 = sbr.rel (0) target = $region21
  $region20: #{_forward_impl.1} parent=0 // pred_region
    _
  $region21: #{_forward_impl.1} parent=0 // pred_fallthru
    _

</llo_original>
